<compile_context>
chip_gen: v6e
topology: v6e:2x2x1
jax: 0.10.0
libtpu: 0.0.40
codegen_flags: <defaults>
</compile_context>

<pallas_src>
import functools

import numpy as np
import jax
import jax.numpy as jnp
from jax.experimental import pallas as pl
from jax.experimental.pallas import tpu as pltpu


# ----------------------------------------------------------------------------
# Deterministic basis construction (faithful numpy port of SESN's steerable_A
# Hermite-Gaussian basis + normalize_basis_by_min_scale).  Pure setup / glue.
# ----------------------------------------------------------------------------
def _hermite_poly(X, n):
    coeff = [0.0] * n + [1.0]
    return np.polynomial.hermite_e.hermeval(X, coeff)


def _onescale_grid_hermite_gaussian(size, scale, max_order):
    X = np.linspace(-(size // 2), size // 2, size)
    Y = np.linspace(-(size // 2), size // 2, size)
    order_y, order_x = np.indices([max_order + 1, max_order + 1])
    G = np.exp(-X ** 2 / (2 * scale ** 2)) / scale
    basis_x = np.stack([G * _hermite_poly(X / scale, n) for n in order_x.ravel()])
    basis_y = np.stack([G * _hermite_poly(Y / scale, n) for n in order_y.ravel()])
    return basis_x[:, :, None] * basis_y[:, None, :]


def steerable_A(size, scales, effective_size):
    max_order = effective_size - 1
    max_scale = max(scales)
    basis_tensors = []
    for scale in scales:
        size_before_pad = int(size * scale / max_scale) // 2 * 2 + 1
        basis = _onescale_grid_hermite_gaussian(size_before_pad, scale, max_order)
        pad = (size - size_before_pad) // 2
        basis = np.pad(basis, ((0, 0), (pad, pad), (pad, pad)))
        basis_tensors.append(basis)
    return np.stack(basis_tensors, 1)  # [num_funcs, num_scales, k, k]


def normalize_basis_by_min_scale(basis):
    norm = np.sqrt((basis ** 2).sum(axis=(2, 3), keepdims=True))[:, [0]]
    return basis / norm


def _round_up(a, b):
    return (a + b - 1) // b * b


def _vmem_capacity_bytes():
    try:
        return int(pltpu.get_tpu_info().vmem_capacity_bytes)
    except Exception:
        return 64 * 1024 * 1024        # conservative default (v7x per-core)


# ----------------------------------------------------------------------------
# Pallas kernel. Grid = (M_tiles, S, N_tiles, K_tiles), kt (reduction)
# innermost. Static specialisation (Python flags) on:
#   n_k           : number of K tiles (1 -> no accumulator scratch)
#   kern_resident : kernel slab is a single constant-index block, sliced here
#   has_bias      : bias fused into the store
# ----------------------------------------------------------------------------
def _ses_matmul_kernel(*refs, TK, TN, n_k, n_tiles, kern_resident, has_bias):
    it = iter(refs)
    a_ref = next(it)                              # (TM, TK)      bf16
    b_ref = next(it)                              # kern (resident or tile)
    bias_ref = next(it) if has_bias else None     # (1, TN)       f32
    o_ref = next(it)                              # (TM, TN)
    acc_ref = next(it) if n_k > 1 else None       # (TM, TN)      f32 scratch

    s = pl.program_id(1)
    n = pl.program_id(2)
    kt = pl.program_id(3)

    if kern_resident:
        # b_ref is the full (S, K_pad, N_pad) slab, fetched once; slice the
        # (TK, TN) chunk for this grid step (aligned offsets -> clean loads).
        k_idx = (pl.ds(pl.multiple_of(kt * TK, TK), TK)
                 if n_k > 1 else slice(None))
        n_idx = (pl.ds(pl.multiple_of(n * TN, TN), TN)
                 if n_tiles > 1 else slice(None))
        b = b_ref[s, k_idx, n_idx]
    else:
        b = b_ref[...]                            # (TK, TN) tile

    contrib = jnp.dot(a_ref[...], b, preferred_element_type=jnp.float32)

    if n_k == 1:
        # Single K tile: straight store, no accumulator round-trip.
        if has_bias:
            contrib = contrib + bias_ref[...]
        o_ref[...] = contrib.astype(o_ref.dtype)
    else:
        @pl.when(kt == 0)
        def _init():
            acc_ref[...] = jnp.zeros_like(acc_ref)

        acc_ref[...] += contrib

        @pl.when(kt == n_k - 1)
        def _store():
            out = acc_ref[...]
            if has_bias:
                out = out + bias_ref[...]
            o_ref[...] = out.astype(o_ref.dtype)


# ----------------------------------------------------------------------------
# Wrapper: kernel construction, im2col layout plumbing, tile sizing,
# pallas_call.
# ----------------------------------------------------------------------------
def ses_conv_h_h(x, weight, basis, *, scale_size, stride=1, padding=0,
                 padding_mode='constant', bias=None,
                 out_store_dtype=jnp.float32,   # bf16 recommended on v5e
                 max_tk=2048):
    B, C, S, H, W = x.shape
    O = weight.shape[0]
    F_ = basis.shape[0]
    k = basis.shape[-1]

    # ---- kernel = weight @ basis (tiny setup matmul, done in f32) -----------
    kern = weight.reshape(-1, F_) @ basis.reshape(F_, -1)
    kern = kern.reshape(O, C, scale_size, S, k, k)
    # -> [S, scale_size, k, k, C, O] -> [S, K, O]  with K index = (i, kh, kw, c)
    kern = jnp.transpose(kern, (3, 2, 4, 5, 1, 0)).reshape(
        S, scale_size * k * k * C, O).astype(jnp.bfloat16)

    # ---- activations: [B,C,S,H,W] -> [S,B,H,W,C], scale pad, spatial pad ----
    # NOTE: PyTorch also computes `value = x.mean()` here but never uses it.
    xk = jnp.transpose(x, (2, 0, 3, 4, 1)).astype(jnp.bfloat16)
    if scale_size != 1:
        xk = jnp.pad(xk, ((0, scale_size - 1), (0, 0), (0, 0), (0, 0), (0, 0)))
    if padding > 0:
        # TODO(synk): non-'constant' padding modes are untested vs PyTorch.
        mode = {'constant': 'constant', 'reflect': 'reflect',
                'replicate': 'edge', 'circular': 'wrap'}[padding_mode]
        xk = jnp.pad(xk, ((0, 0), (0, 0), (padding, padding),
                          (padding, padding), (0, 0)), mode=mode)
    _, _, Hp, Wp, _ = xk.shape
    h_out = (Hp - k) // stride + 1
    w_out = (Wp - k) // stride + 1

    # TODO(synk): for large C the remaining ~k^2 HBM-read lever is building
    # this im2col slab in-kernel from a VMEM-resident input row band; with the
    # tiny channel counts used here the channel-last relayout is better done
    # once by XLA, so the patch slab is still materialized wrapper-side.
    # scale windows: [scale_size, S, B, Hp, Wp, C]
    xs = jnp.stack([xk[i:i + S] for i in range(scale_size)], axis=0)
    taps = []
    for kh in range(k):
        for kw in range(k):
            taps.append(xs[..., kh:kh + (h_out - 1) * stride + 1:stride,
                               kw:kw + (w_out - 1) * stride + 1:stride, :])
    # [scale_size, S, B, h', w', k*k, C] -> [S, B, h', w', scale_size, k*k, C]
    patches = jnp.stack(taps, axis=-2)
    patches = jnp.transpose(patches, (1, 2, 3, 4, 0, 5, 6))
    M = B * h_out * w_out
    K = scale_size * k * k * C
    patches = patches.reshape(S, M, K)

    # ---- tile sizing from the per-generation VMEM budget ---------------------
    vmem_cap = _vmem_capacity_bytes()        # 128 MiB v5e/v6e, 64 MiB v7x
    budget = int(vmem_cap * 0.7)             # leave headroom for compiler scratch

    # N: lane-dense output; TN=256 for O>128 (256-wide MXU on v6e/v7x).
    if O <= 128:
        N_pad, TN = 128, 128
    else:
        N_pad = _round_up(O, 256)
        TN = 256
    n_tiles = N_pad // TN

    # K: multiples of 256 (full-depth MXU contraction passes).
    K_pad = _round_up(K, 256)
    n_k = -(-K_pad // max_tk)
    TK = _round_up(-(-K_pad // n_k), 256)
    K_pad = TK * n_k

    out_bytes = jnp.dtype(out_store_dtype).itemsize

    # Kernel slab residency: DMA the whole [S, K_pad, N_pad] slab once if it
    # fits comfortably (typical SESN sizes), otherwise fall back to per-tile.
    kern_res_bytes = 2 * S * K_pad * N_pad * 2           # double-buffered bf16
    kern_resident = kern_res_bytes <= min(budget // 3, 24 << 20)
    kern_vmem = kern_res_bytes if kern_resident else 2 * TK * TN * 2

    # M: as large as the VMEM budget allows (amortizes ~0.35us/step overhead).
    def _footprint(tm):
        f = 2 * tm * TK * 2                   # patches, double-buffered bf16
        f += kern_vmem
        f += 2 * tm * TN * out_bytes          # output, double-buffered
        if n_k > 1:
            f += tm * TN * 4                  # f32 accumulator scratch
        return f

    tm_cap = 2048 if vmem_cap >= (100 << 20) else 1024
    TM = min(tm_cap, _round_up(M, 8))
    while TM > 8 and _footprint(TM) > budget:
        TM = max(8, _round_up(TM // 2, 8))
    M_pad = _round_up(M, TM)

    patches = jnp.pad(patches, ((0, 0), (0, M_pad - M), (0, K_pad - K)))
    kern = jnp.pad(kern, ((0, 0), (0, K_pad - K), (0, N_pad - O)))

    has_bias = bias is not None
    operands = [patches, kern]
    in_specs = [
        # leading size-1 dims squeezed (None) -> kernel sees 2-D refs.
        pl.BlockSpec((None, TM, TK), lambda m, s, n, kt: (s, m, kt)),
        (pl.BlockSpec((S, K_pad, N_pad), lambda m, s, n, kt: (0, 0, 0))
         if kern_resident else
         pl.BlockSpec((None, TK, TN), lambda m, s, n, kt: (s, kt, n))),
    ]
    if has_bias:
        bias_pad = jnp.pad(bias.astype(jnp.float32).reshape(1, O),
                           ((0, 0), (0, N_pad - O)))
        operands.append(bias_pad)
        in_specs.append(pl.BlockSpec((1, TN), lambda m, s, n, kt: (0, n)))

    # M-tile axis outermost (largest parallel extent -> balanced v7x sharding);
    # reduction axis kt innermost ("arbitrary") -> acc scratch reuse is safe.
    grid = (M_pad // TM, S, n_tiles, n_k)
    scratch = [pltpu.VMEM((TM, TN), jnp.float32)] if n_k > 1 else []

    vmem_limit = min(int(vmem_cap * 0.9),
                     max(_footprint(TM) + (16 << 20), 32 << 20))

    kernel = functools.partial(
        _ses_matmul_kernel, TK=TK, TN=TN, n_k=n_k, n_tiles=n_tiles,
        kern_resident=kern_resident, has_bias=has_bias)

    out_pad = pl.pallas_call(
        kernel,
        out_shape=jax.ShapeDtypeStruct((S, M_pad, N_pad), out_store_dtype),
        grid_spec=pltpu.PrefetchScalarGridSpec(
            num_scalar_prefetch=0,
            grid=grid,
            in_specs=in_specs,
            out_specs=pl.BlockSpec((None, TM, TN), lambda m, s, n, kt: (s, m, n)),
            scratch_shapes=scratch,
        ),
        compiler_params=pltpu.CompilerParams(
            dimension_semantics=("parallel", "parallel", "parallel", "arbitrary"),
            vmem_limit_bytes=vmem_limit,
        ),
    )(*operands)

    # ---- strip padding, restore [B, O, S, H', W'] ----------------------------
    # (bias already fused in-kernel; this is a single fused XLA slice/transpose)
    out = out_pad[:, :M, :O].astype(jnp.float32).reshape(S, B, h_out, w_out, O)
    out = jnp.transpose(out, (1, 4, 0, 2, 3))
    return out


# ----------------------------------------------------------------------------
# Pure-JAX reference (direct translation of the PyTorch forward) for checking.
# ----------------------------------------------------------------------------
def reference_forward(x, weight, basis, scale_size, stride, padding):
    F_, S, k, _ = basis.shape
    O, C = weight.shape[0], weight.shape[1]
    kern = (weight.reshape(-1, F_) @ basis.reshape(F_, -1))
    kern = kern.reshape(O, C, scale_size, S, k, k)
    kern = jnp.transpose(kern, (3, 0, 1, 2, 4, 5)).reshape(S * O, C, scale_size, k, k)
    if scale_size != 1:
        x = jnp.pad(x, ((0, 0), (0, 0), (0, scale_size - 1), (0, 0), (0, 0)))
    out = 0.0
    for i in range(scale_size):
        x_ = x[:, :, i:i + S]
        B = x_.shape[0]
        H, W = x_.shape[3], x_.shape[4]
        x_ = jnp.transpose(x_, (0, 2, 1, 3, 4)).reshape(B, S * C, H, W)
        if padding > 0:
            x_ = jnp.pad(x_, ((0, 0), (0, 0), (padding, padding), (padding, padding)))
        out = out + jax.lax.conv_general_dilated(
            x_, kern[:, :, i], window_strides=(stride, stride), padding='VALID',
            feature_group_count=S, dimension_numbers=('NCHW', 'OIHW', 'NCHW'))
    B, C_, H_, W_ = out.shape
    out = out.reshape(B, S, -1, H_, W_)
    return jnp.transpose(out, (0, 2, 1, 3, 4))


if __name__ == "__main__":
    # Module hyper-parameters (small but representative of SESConv_H_H usage).
    B, Cin, Cout = 2, 4, 4
    scale_size, kernel_size, effective_size = 2, 7, 3
    scales = [1.0, 1.41, 2.0]
    S = len(scales)
    stride, padding = 1, 3
    H = W = 16

    # Buffer: steerable basis (deterministic, no checkpoint).
    basis_np = normalize_basis_by_min_scale(
        steerable_A(kernel_size, [round(s, 3) for s in scales], effective_size))
    basis = jnp.asarray(basis_np, jnp.float32)          # [num_funcs, S, k, k]
    num_funcs = basis.shape[0]

    # Parameter: kaiming_uniform_(a=sqrt(5)) -> U(-1/sqrt(fan_in), 1/sqrt(fan_in))
    key = jax.random.PRNGKey(0)
    wkey, xkey, bkey = jax.random.split(key, 3)
    fan_in = Cin * scale_size * num_funcs
    bound = 1.0 / np.sqrt(fan_in)
    weight = jax.random.uniform(wkey, (Cout, Cin, scale_size, num_funcs),
                                jnp.float32, minval=-bound, maxval=bound)

    # Input [B, C, S, H, W]
    x = jax.random.normal(xkey, (B, Cin, S, H, W), jnp.float32)

    out = jax.block_until_ready(
        ses_conv_h_h(x, weight, basis, scale_size=scale_size, stride=stride,
                     padding=padding, padding_mode='constant', bias=None))
    assert out.shape == (B, Cout, S, H, W), out.shape

    # bf16 MXU inputs with f32 accumulation -> bf16-level tolerance vs f32 ref.
    ref = jax.block_until_ready(
        reference_forward(x, weight, basis, scale_size, stride, padding))
    np.testing.assert_allclose(np.asarray(out), np.asarray(ref),
                               rtol=2e-2, atol=2e-2)

    # stride=2 path (exercises wrapper-side stride decimation and M-tile pad).
    out2 = jax.block_until_ready(
        ses_conv_h_h(x, weight, basis, scale_size=scale_size, stride=2,
                     padding=padding, padding_mode='constant', bias=None))
    ref2 = jax.block_until_ready(
        reference_forward(x, weight, basis, scale_size, 2, padding))
    np.testing.assert_allclose(np.asarray(out2), np.asarray(ref2),
                               rtol=2e-2, atol=2e-2)

    # Fused bias + forced K split (exercises the accumulator path and the
    # in-kernel TK slicing of the resident kernel slab).
    bias_v = 0.1 * jax.random.normal(bkey, (Cout,), jnp.float32)
    out3 = jax.block_until_ready(
        ses_conv_h_h(x, weight, basis, scale_size=scale_size, stride=stride,
                     padding=padding, padding_mode='constant', bias=bias_v,
                     max_tk=256))
    ref3 = ref + bias_v.reshape(1, -1, 1, 1, 1)
    np.testing.assert_allclose(np.asarray(out3), np.asarray(ref3),
                               rtol=2e-2, atol=2e-2)

    print("KERNEL_OK")
</pallas_src>

<mosaic_0001>
module attributes {stable_mosaic.version = 11 : i64} {
  func.func @_ses_matmul_kernel(%arg0: i32, %arg1: i32, %arg2: i32, %arg3: i32, %arg4: memref<1x512x512xbf16, #tpu.memory_space<vmem>>, %arg5: memref<3x512x128xbf16, #tpu.memory_space<vmem>>, %arg6: memref<1x512x128xf32, #tpu.memory_space<vmem>>) attributes {dimension_semantics = [#tpu.dimension_semantics<parallel>, #tpu.dimension_semantics<parallel>, #tpu.dimension_semantics<parallel>, #tpu.dimension_semantics<arbitrary>], iteration_bounds = array<i64: 1, 3, 1, 1>, scalar_prefetch = 0 : i64, scratch_operands = 0 : i64, tpu.core_type = #tpu.core_type<tc>, window_params = [{transform_indices = @transform_0, window_bounds = array<i64: 1, 512, 512>}, {pipeline_mode = #tpu.pipeline_mode<synchronous>, transform_indices = @transform_1, window_bounds = array<i64: 3, 512, 128>}, {transform_indices = @transform_2, window_bounds = array<i64: 1, 512, 128>}]} {
    %0 = arith.index_cast %arg1 : i32 to index
    %c0 = arith.constant 0 : index
    %c0_0 = arith.constant 0 : index
    %1 = vector.load %arg5[%0, %c0, %c0_0] : memref<3x512x128xbf16, #tpu.memory_space<vmem>>, vector<1x512x128xbf16>
    %2 = vector.shape_cast %1 : vector<1x512x128xbf16> to vector<512x128xbf16>
    %c0_1 = arith.constant 0 : index
    %c0_2 = arith.constant 0 : index
    %c0_3 = arith.constant 0 : index
    %3 = vector.load %arg4[%c0_1, %c0_2, %c0_3] : memref<1x512x512xbf16, #tpu.memory_space<vmem>>, vector<1x512x512xbf16>
    %4 = vector.shape_cast %3 : vector<1x512x512xbf16> to vector<512x512xbf16>
    %cst = arith.constant dense<0.000000e+00> : vector<512x128xf32>
    %5 = tpu.matmul %4, %2, %cst {dimension_numbers = #tpu.dot_dimension_numbers<[1], [0], [0], [1], [0, 0, 1, 1], [], []>} : vector<512x512xbf16>, vector<512x128xbf16>, vector<512x128xf32> -> vector<512x128xf32>
    %c0_4 = arith.constant 0 : index
    %c0_5 = arith.constant 0 : index
    %c0_6 = arith.constant 0 : index
    %6 = vector.load %arg6[%c0_4, %c0_5, %c0_6] : memref<1x512x128xf32, #tpu.memory_space<vmem>>, vector<1x512x128xf32>
    %7 = vector.shape_cast %6 : vector<1x512x128xf32> to vector<512x128xf32>
    %8 = vector.shape_cast %5 : vector<512x128xf32> to vector<1x512x128xf32>
    tpu.vector_store %arg6[%c0_4, %c0_5, %c0_6], %8 {strides = array<i32>} : memref<1x512x128xf32, #tpu.memory_space<vmem>>, vector<1x512x128xf32>,
    return
  }
  func.func @transform_0(%arg0: i32, %arg1: i32, %arg2: i32, %arg3: i32) -> (i32, i32, i32) {
    %c0_i32 = arith.constant 0 : i32
    return %arg1, %arg0, %arg3 : i32, i32, i32
  }
  func.func @transform_1(%arg0: i32, %arg1: i32, %arg2: i32, %arg3: i32) -> (i32, i32, i32) {
    %c0_i32 = arith.constant 0 : i32
    %c0_i32_0 = arith.constant 0 : i32
    %c0_i32_1 = arith.constant 0 : i32
    %c0_i32_2 = arith.constant 0 : i32
    return %c0_i32, %c0_i32_0, %c0_i32_1 : i32, i32, i32
  }
  func.func @transform_2(%arg0: i32, %arg1: i32, %arg2: i32, %arg3: i32) -> (i32, i32, i32) {
    %c0_i32 = arith.constant 0 : i32
    return %arg1, %arg0, %arg2 : i32, i32, i32
  }
}

</mosaic_0001>

<llo_original>
// kernel: tpu_custom_call.1
$region0: #{tpu_custom_call.1}
  #allocation0 [shape = 'u32[]', space=smem, size = 0x4, offset = 0x4, fixed_abs, tag = 'smem constant byte address 0x4 - core index']
  #allocation1 [shape = 'u32[144,128]{1,0:T(1,128)}', space=vmem, size = 0x12000, scoped, tag = 'internal scratch']
  %s0 = inlined_call_operand.hbm [shape: bf16[3,512,512], index: 0, kind: input, shape index: {}]
  %s1 = inlined_call_operand.hbm [shape: bf16[3,512,128], index: 1, kind: input, shape index: {}]
  %s2 = inlined_call_operand.hbm [shape: f32[3,512,128], index: 2, kind: output, shape index: {}]
  %s3 = sld [smem:[#allocation0]]
  $region49: #{tpu_custom_call.1} parent=0
    _
  %s5 = ssub.s32 1, %s3
  %s6 = scalar_select 0, %s5, %s3
  $region1: #{tpu_custom_call.1} parent=0
    #allocation2 [shape = 'u8[1048576]{0}', space=vmem, size = 0x100000, scoped, tag = 'input window, operand 0']
    #allocation3 [shape = 's32[2]{0}', space=sflag, size = 0x8, scoped, tag = 'scoped memory for tpu_custom_call.1']
    #allocation4 [shape = 's32[2]{0}', space=sflag, size = 0x8, scoped, tag = 'scoped memory for tpu_custom_call.1']
    #allocation5 [shape = 'u8[393216]{0}', space=vmem, size = 0x60000, scoped, tag = 'input window, operand 1, single buffered']
    #allocation6 [shape = 's32[1]{0}', space=sflag, size = 0x4, scoped, tag = 'scoped memory for tpu_custom_call.1']
    #allocation7 [shape = 'u8[524288]{0}', space=vmem, size = 0x80000, scoped, tag = 'output window, operand 0']
    %7 = vsyncpa [#allocation3], 0
    %s8 = scalar_lea.sflag [#allocation3], 1
    %9 = vsyncpa %s8, 0
    %10 = vsyncpa [#allocation6], 0
    %11 = vsyncpa [#allocation4], 0
    %s12 = scalar_lea.sflag [#allocation4], 1
    %13 = vsyncpa %s12, 0
    loop: start=0, step=1, limit=5
    $region2: #{tpu_custom_call.1} parent=1 // loop_pre_header
      _
    $region3: #{tpu_custom_call.1} parent=1 // loop_header
      %s15 = sphi 0, %s19
      %p16 = scmp.ge.s32.totalorder %s15, 5
      %s22 = sphi 0, %s48
      %s23 = sphi 0, %s44
      %s24 = sphi 0, %s40
      %s25 = sphi 0, %s36
      %s26 = sphi 0, %s22
      %s27 = sphi 0, %s23
      %s28 = sphi 0, %s24
      %s29 = sphi 0, %s25
      %s30 = sphi 0, %s26
      %s31 = sphi 0, %s27
      %s32 = sphi 0, %s28
      %s33 = sphi 0, %s29
      %s55 = sphi 0, %s57
      %s58 = sphi 0, %s55
      %s59 = sphi 0, %s58
      %s75 = sphi 0, %s59
      %s79 = sphi 0, %s79
      %s81 = sphi 0, %s79
      %s82 = sphi 0, %s81
      %s96 = sphi 0, %s82
      %s106 = sphi 0, %s108
      %s109 = sphi 0, %s106
      %s110 = sphi 0, %s109
      %s126 = sphi 0, %s110
    $region4: #{tpu_custom_call.1} parent=1 // loop_header_branch
      %18 = sbr.rel (%p16) target = $region8
    $region5: #{tpu_custom_call.1} parent=1 // loop_body
      %s20 = ssub.s32 %s15, 1
      %s21 = ssub.s32 %s15, 2
      %s34 = sadd.s32 1, %s25
      %p35 = scmp.ge.s32.totalorder %s34, 1
      %s36 = scalar_select %p35, 0, %s34
      %s37 = sadd.s32 1, %s24
      %s38 = scalar_select %p35, %s37, %s24
      %p39 = scmp.ge.s32.totalorder %s38, 1
      %s40 = scalar_select %p39, 0, %s38
      %s41 = sadd.s32 1, %s23
      %s42 = scalar_select %p39, %s41, %s23
      %p43 = scmp.ge.s32.totalorder %s42, 3
      %s44 = scalar_select %p43, 0, %s42
      %s45 = sadd.s32 1, %s22
      %s46 = scalar_select %p43, %s45, %s22
      %p47 = scmp.ge.s32.totalorder %s46, 1
      %s48 = scalar_select %p47, 0, %s46
      %s49 = ssub.s32 %s23, %s44
      %s50 = ssub.s32 %s22, %s48
      %s51 = sor.u32 %s49, %s50
      %s52 = ssub.s32 %s25, %s36
      %s53 = sor.u32 %s51, %s52
      %p54 = scmp.eq.s32.totalorder %s53, 0
      %s56 = sadd.s32 %s55, 1
      %s57 = scalar_select %p54, %s55, %s56
      %p60 = pneg %p54
      %p61 = scmp.eq.s32.totalorder %s15, 2
      %p62 = por %p60, %p61
      %p63 = scmp.ne.s32.totalorder %s55, %s58
      %p64 = scmp.eq.s32.totalorder %s15, 0
      %p65 = por %p63, %p64
      %p66 = scmp.ne.s32.totalorder %s55, %s58
      %p67 = scmp.eq.s32.totalorder %s20, 2
      %p68 = por %p66, %p67
      %p69 = scmp.ne.s32.totalorder %s58, %s59
      %p70 = scmp.eq.s32.totalorder %s20, 0
      %p71 = por %p69, %p70
      %p72 = scmp.ne.s32.totalorder %s58, %s59
      %p73 = scmp.eq.s32.totalorder %s21, 2
      %p74 = por %p72, %p73
      %p76 = scmp.ne.s32.totalorder %s59, %s75
      %p77 = scmp.eq.s32.totalorder %s21, 0
      %p78 = por %p76, %p77
      %s80 = sadd.s32 %s79, 1
      %p83 = scmp.eq.s32.totalorder %s15, 2
      %p84 = scmp.ne.s32.totalorder %s79, %s81
      %p85 = scmp.eq.s32.totalorder %s15, 0
      %p86 = por %p84, %p85
      %p87 = scmp.ne.s32.totalorder %s79, %s81
      %p88 = scmp.eq.s32.totalorder %s20, 2
      %p89 = por %p87, %p88
      %p90 = scmp.ne.s32.totalorder %s81, %s82
      %p91 = scmp.eq.s32.totalorder %s20, 0
      %p92 = por %p90, %p91
      %p93 = scmp.ne.s32.totalorder %s81, %s82
      %p94 = scmp.eq.s32.totalorder %s21, 2
      %p95 = por %p93, %p94
      %p97 = scmp.ne.s32.totalorder %s82, %s96
      %p98 = scmp.eq.s32.totalorder %s21, 0
      %p99 = por %p97, %p98
      %s100 = ssub.s32 %s23, %s44
      %s101 = ssub.s32 %s22, %s48
      %s102 = sor.u32 %s100, %s101
      %s103 = ssub.s32 %s24, %s40
      %s104 = sor.u32 %s102, %s103
      %p105 = scmp.eq.s32.totalorder %s104, 0
      %s107 = sadd.s32 %s106, 1
      %s108 = scalar_select %p105, %s106, %s107
      %p111 = pneg %p105
      %p112 = scmp.eq.s32.totalorder %s15, 2
      %p113 = por %p111, %p112
      %p114 = scmp.ne.s32.totalorder %s106, %s109
      %p115 = scmp.eq.s32.totalorder %s15, 0
      %p116 = por %p114, %p115
      %p117 = scmp.ne.s32.totalorder %s106, %s109
      %p118 = scmp.eq.s32.totalorder %s20, 2
      %p119 = por %p117, %p118
      %p120 = scmp.ne.s32.totalorder %s109, %s110
      %p121 = scmp.eq.s32.totalorder %s20, 0
      %p122 = por %p120, %p121
      %p123 = scmp.ne.s32.totalorder %s109, %s110
      %p124 = scmp.eq.s32.totalorder %s21, 2
      %p125 = por %p123, %p124
      %p127 = scmp.ne.s32.totalorder %s110, %s126
      %p128 = scmp.eq.s32.totalorder %s21, 0
      %p129 = por %p127, %p128
      %p130 = scmp.le.s32.totalorder 1, %s15
      %p131 = scmp.lt.s32.totalorder %s15, 4
      %p132 = pnand %p130, %p131
      %p133 = pneg %p132
      // Predicated region
      $region9: #{tpu_custom_call.1} parent=5 // pred_check
        _
      $region10: #{tpu_custom_call.1} parent=5 // pred_check_branch
        %135 = sbr.rel (%p132) target = $region12
      $region11: #{tpu_custom_call.1} parent=5 // pred_region
        %s136 = ssub.s32 %s15, 1
        // Predicated region
        $region13: #{tpu_custom_call.1} parent=11 // pred_check
          %p137 = pneg %p92
        $region14: #{tpu_custom_call.1} parent=11 // pred_check_branch
          %139 = sbr.rel (%p137) target = $region16
        $region15: #{tpu_custom_call.1} parent=11 // pred_region
          %s141 = ssub.s32 12288, 12288
          %142 = vsyncadd [#allocation6], %s141
          %s143 = sshll.u32 [#allocation5], 4
          %s144 = int_to_ptr.vmem [resolvable:$true] %s143
          %149 = dma.hbm_to_vmem [thread:$0]  %s1, 12288, %s144, [#allocation6], 64, 64, 4
        $region16: #{tpu_custom_call.1} parent=11 // pred_fallthru
          _
      $region12: #{tpu_custom_call.1} parent=5 // pred_fallthru
        _
      %p150 = scmp.lt.s32.totalorder %s15, 3
      // Predicated region
      $region17: #{tpu_custom_call.1} parent=5 // pred_check
        %p151 = pneg %p150
      $region18: #{tpu_custom_call.1} parent=5 // pred_check_branch
        %153 = sbr.rel (%p151) target = $region20
      $region19: #{tpu_custom_call.1} parent=5 // pred_region
        // Predicated region
        $region21: #{tpu_custom_call.1} parent=19 // pred_check
          %p154 = pneg %p65
        $region22: #{tpu_custom_call.1} parent=19 // pred_check_branch
          %156 = sbr.rel (%p154) target = $region24
        $region23: #{tpu_custom_call.1} parent=19 // pred_region
          %s157 = sand.u32 %s55, 1
          %s158 = scalar_lea.sflag [#allocation3], %s157
          %s159 = sand.u32 %s55, 1
          %s160 = smul.addr %s159, 1024
          %s161 = scalar_lea.vmem [#allocation2], %s160
          %s162 = smul.u32 64, %s22
          %s163 = smul.u32 4, %s25
          %s165 = ssub.s32 16384, 16384
          %166 = vsyncadd %s158, %s165
          %s167 = smul.addr %s162, 4
          %s168 = sadd.s32 %s163, %s167
          %s169 = smul.addr %s23, 256
          %s170 = sadd.s32 %s168, %s169
          %s171 = smul.addr %s170, 64
          %s172 = scalar_lea.hbm %s0, %s171
          %s173 = sshll.u32 %s161, 4
          %s174 = int_to_ptr.vmem [resolvable:$true] %s173
          %179 = dma.hbm_to_vmem [thread:$0]  %s172, 16384, %s174, %s158, 256, 256, 16
        $region24: #{tpu_custom_call.1} parent=19 // pred_fallthru
          _
      $region20: #{tpu_custom_call.1} parent=5 // pred_fallthru
        _
      %p180 = scmp.le.s32.totalorder 1, %s15
      %p181 = scmp.lt.s32.totalorder %s15, 4
      %p182 = pnand %p180, %p181
      %p183 = pneg %p182
      // Predicated region
      $region25: #{tpu_custom_call.1} parent=5 // pred_check
        _
      $region26: #{tpu_custom_call.1} parent=5 // pred_check_branch
        %185 = sbr.rel (%p182) target = $region28
      $region27: #{tpu_custom_call.1} parent=5 // pred_region
        %s186 = ssub.s32 %s15, 1
        %s187 = sand.u32 %s58, 1
        %s188 = scalar_lea.sflag [#allocation3], %s187
        %s189 = sand.u32 %s58, 1
        %s190 = smul.addr %s189, 1024
        %s191 = scalar_lea.vmem [#allocation2], %s190
        // Predicated region
        $region29: #{tpu_custom_call.1} parent=27 // pred_check
          %p192 = pneg %p71
        $region30: #{tpu_custom_call.1} parent=27 // pred_check_branch
          %194 = sbr.rel (%p192) target = $region32
        $region31: #{tpu_custom_call.1} parent=27 // pred_region
          %195 = dma.done %s188, 16384
        $region32: #{tpu_custom_call.1} parent=27 // pred_fallthru
          _
        // Predicated region
        $region33: #{tpu_custom_call.1} parent=27 // pred_check
          %p196 = pneg %p92
        $region34: #{tpu_custom_call.1} parent=27 // pred_check_branch
          %198 = sbr.rel (%p196) target = $region36
        $region35: #{tpu_custom_call.1} parent=27 // pred_region
          %199 = dma.done [#allocation6], 12288
        $region36: #{tpu_custom_call.1} parent=27 // pred_fallthru
          _
        %s200 = sand.u32 %s58, 1
        %s201 = scalar_lea.sflag [#allocation3], %s200
        %s202 = sand.u32 %s58, 1
        %s203 = smul.addr %s202, 1024
        %s204 = scalar_lea.vmem [#allocation2], %s203
        %p205 = pneg %p71
        %p206 = pneg %p68
        %p207 = pneg %p92
        %p208 = pneg %p89
        %p209 = pneg %p122
        %p210 = pneg %p119
        %s211 = sand.u32 %s109, 1
        %s212 = scalar_lea.sflag [#allocation4], %s211
        %s213 = sand.u32 %s109, 1
        %s214 = smul.addr %s213, 512
        %s215 = scalar_lea.vmem [#allocation7], %s214
        %s216 = smul.u32 64, %s26
        %s217 = smul.u32 4, %s29
        %s218 = smul.u32 64, %s26
        %s220 = smul.u32 %s27, 64
        %s221 = smul.addr %s220, 4
        %s222 = scalar_lea.vmem [#allocation5], %s221
        %v223 = vld [vmem:[%s222] sm:$0xf]
        %v224 = vld [vmem:[%s222 + $0x4] sm:$0xf]
        %v225 = vld [vmem:[%s222 + $0x8] sm:$0xf]
        %v226 = vld [vmem:[%s222 + $0xc] sm:$0xf]
        %v227 = vld [vmem:[%s222 + $0x10] sm:$0xf]
        %v228 = vld [vmem:[%s222 + $0x14] sm:$0xf]
        %v229 = vld [vmem:[%s222 + $0x18] sm:$0xf]
        %v230 = vld [vmem:[%s222 + $0x1c] sm:$0xf]
        %v231 = vld [vmem:[%s222 + $0x20] sm:$0xf]
        %v232 = vld [vmem:[%s222 + $0x24] sm:$0xf]
        %v233 = vld [vmem:[%s222 + $0x28] sm:$0xf]
        %v234 = vld [vmem:[%s222 + $0x2c] sm:$0xf]
        %v235 = vld [vmem:[%s222 + $0x30] sm:$0xf]
        %v236 = vld [vmem:[%s222 + $0x34] sm:$0xf]
        %v237 = vld [vmem:[%s222 + $0x38] sm:$0xf]
        %v238 = vld [vmem:[%s222 + $0x3c] sm:$0xf]
        %v239 = vld [vmem:[%s222 + $0x40] sm:$0xf]
        %v240 = vld [vmem:[%s222 + $0x44] sm:$0xf]
        %v241 = vld [vmem:[%s222 + $0x48] sm:$0xf]
        %v242 = vld [vmem:[%s222 + $0x4c] sm:$0xf]
        %v243 = vld [vmem:[%s222 + $0x50] sm:$0xf]
        %v244 = vld [vmem:[%s222 + $0x54] sm:$0xf]
        %v245 = vld [vmem:[%s222 + $0x58] sm:$0xf]
        %v246 = vld [vmem:[%s222 + $0x5c] sm:$0xf]
        %v247 = vld [vmem:[%s222 + $0x60] sm:$0xf]
        %v248 = vld [vmem:[%s222 + $0x64] sm:$0xf]
        %v249 = vld [vmem:[%s222 + $0x68] sm:$0xf]
        %v250 = vld [vmem:[%s222 + $0x6c] sm:$0xf]
        %v251 = vld [vmem:[%s222 + $0x70] sm:$0xf]
        %v252 = vld [vmem:[%s222 + $0x74] sm:$0xf]
        %v253 = vld [vmem:[%s222 + $0x78] sm:$0xf]
        %v254 = vld [vmem:[%s222 + $0x7c] sm:$0xf]
        %v255 = vld [vmem:[%s222 + $0x80] sm:$0xf]
        %v256 = vld [vmem:[%s222 + $0x84] sm:$0xf]
        %v257 = vld [vmem:[%s222 + $0x88] sm:$0xf]
        %v258 = vld [vmem:[%s222 + $0x8c] sm:$0xf]
        %v259 = vld [vmem:[%s222 + $0x90] sm:$0xf]
        %v260 = vld [vmem:[%s222 + $0x94] sm:$0xf]
        %v261 = vld [vmem:[%s222 + $0x98] sm:$0xf]
        %v262 = vld [vmem:[%s222 + $0x9c] sm:$0xf]
        %v263 = vld [vmem:[%s222 + $0xa0] sm:$0xf]
        %v264 = vld [vmem:[%s222 + $0xa4] sm:$0xf]
        %v265 = vld [vmem:[%s222 + $0xa8] sm:$0xf]
        %v266 = vld [vmem:[%s222 + $0xac] sm:$0xf]
        %v267 = vld [vmem:[%s222 + $0xb0] sm:$0xf]
        %v268 = vld [vmem:[%s222 + $0xb4] sm:$0xf]
        %v269 = vld [vmem:[%s222 + $0xb8] sm:$0xf]
        %v270 = vld [vmem:[%s222 + $0xbc] sm:$0xf]
        %v271 = vld [vmem:[%s222 + $0xc0] sm:$0xf]
        %v272 = vld [vmem:[%s222 + $0xc4] sm:$0xf]
        %v273 = vld [vmem:[%s222 + $0xc8] sm:$0xf]
        %v274 = vld [vmem:[%s222 + $0xcc] sm:$0xf]
        %v275 = vld [vmem:[%s222 + $0xd0] sm:$0xf]
        %v276 = vld [vmem:[%s222 + $0xd4] sm:$0xf]
        %v277 = vld [vmem:[%s222 + $0xd8] sm:$0xf]
        %v278 = vld [vmem:[%s222 + $0xdc] sm:$0xf]
        %v279 = vld [vmem:[%s222 + $0xe0] sm:$0xf]
        %v280 = vld [vmem:[%s222 + $0xe4] sm:$0xf]
        %v281 = vld [vmem:[%s222 + $0xe8] sm:$0xf]
        %v282 = vld [vmem:[%s222 + $0xec] sm:$0xf]
        %v283 = vld [vmem:[%s222 + $0xf0] sm:$0xf]
        %v284 = vld [vmem:[%s222 + $0xf4] sm:$0xf]
        %v285 = vld [vmem:[%s222 + $0xf8] sm:$0xf]
        %v286 = vld [vmem:[%s222 + $0xfc] sm:$0xf]
        %v287 = vld [vmem:[%s191] sm:$0xff]
        %v288 = vld [vmem:[%s191 + $0x8] sm:$0xff]
        %v289 = vld [vmem:[%s191 + $0x10] sm:$0xff]
        %v290 = vld [vmem:[%s191 + $0x18] sm:$0xff]
        %v291 = vld [vmem:[%s191 + $0x20] sm:$0xff]
        %v292 = vld [vmem:[%s191 + $0x28] sm:$0xff]
        %v293 = vld [vmem:[%s191 + $0x30] sm:$0xff]
        %v294 = vld [vmem:[%s191 + $0x38] sm:$0xff]
        %v295 = vld [vmem:[%s191 + $0x40] sm:$0xff]
        %v296 = vld [vmem:[%s191 + $0x48] sm:$0xff]
        %v297 = vld [vmem:[%s191 + $0x50] sm:$0xff]
        %v298 = vld [vmem:[%s191 + $0x58] sm:$0xff]
        %v299 = vld [vmem:[%s191 + $0x60] sm:$0xff]
        %v300 = vld [vmem:[%s191 + $0x68] sm:$0xff]
        %v301 = vld [vmem:[%s191 + $0x70] sm:$0xff]
        %v302 = vld [vmem:[%s191 + $0x78] sm:$0xff]
        %v303 = vld [vmem:[%s191 + $0x80] sm:$0xff]
        %v304 = vld [vmem:[%s191 + $0x88] sm:$0xff]
        %v305 = vld [vmem:[%s191 + $0x90] sm:$0xff]
        %v306 = vld [vmem:[%s191 + $0x98] sm:$0xff]
        %v307 = vld [vmem:[%s191 + $0xa0] sm:$0xff]
        %v308 = vld [vmem:[%s191 + $0xa8] sm:$0xff]
        %v309 = vld [vmem:[%s191 + $0xb0] sm:$0xff]
        %v310 = vld [vmem:[%s191 + $0xb8] sm:$0xff]
        %v311 = vld [vmem:[%s191 + $0xc0] sm:$0xff]
        %v312 = vld [vmem:[%s191 + $0xc8] sm:$0xff]
        %v313 = vld [vmem:[%s191 + $0xd0] sm:$0xff]
        %v314 = vld [vmem:[%s191 + $0xd8] sm:$0xff]
        %v315 = vld [vmem:[%s191 + $0xe0] sm:$0xff]
        %v316 = vld [vmem:[%s191 + $0xe8] sm:$0xff]
        %v317 = vld [vmem:[%s191 + $0xf0] sm:$0xff]
        %v318 = vld [vmem:[%s191 + $0xf8] sm:$0xff]
        %v319 = vld [vmem:[%s191 + $0x100] sm:$0xff]
        %v320 = vld [vmem:[%s191 + $0x108] sm:$0xff]
        %v321 = vld [vmem:[%s191 + $0x110] sm:$0xff]
        %v322 = vld [vmem:[%s191 + $0x118] sm:$0xff]
        %v323 = vld [vmem:[%s191 + $0x120] sm:$0xff]
        %v324 = vld [vmem:[%s191 + $0x128] sm:$0xff]
        %v325 = vld [vmem:[%s191 + $0x130] sm:$0xff]
        %v326 = vld [vmem:[%s191 + $0x138] sm:$0xff]
        %v327 = vld [vmem:[%s191 + $0x140] sm:$0xff]
        %v328 = vld [vmem:[%s191 + $0x148] sm:$0xff]
        %v329 = vld [vmem:[%s191 + $0x150] sm:$0xff]
        %v330 = vld [vmem:[%s191 + $0x158] sm:$0xff]
        %v331 = vld [vmem:[%s191 + $0x160] sm:$0xff]
        %v332 = vld [vmem:[%s191 + $0x168] sm:$0xff]
        %v333 = vld [vmem:[%s191 + $0x170] sm:$0xff]
        %v334 = vld [vmem:[%s191 + $0x178] sm:$0xff]
        %v335 = vld [vmem:[%s191 + $0x180] sm:$0xff]
        %v336 = vld [vmem:[%s191 + $0x188] sm:$0xff]
        %v337 = vld [vmem:[%s191 + $0x190] sm:$0xff]
        %v338 = vld [vmem:[%s191 + $0x198] sm:$0xff]
        %v339 = vld [vmem:[%s191 + $0x1a0] sm:$0xff]
        %v340 = vld [vmem:[%s191 + $0x1a8] sm:$0xff]
        %v341 = vld [vmem:[%s191 + $0x1b0] sm:$0xff]
        %v342 = vld [vmem:[%s191 + $0x1b8] sm:$0xff]
        %v343 = vld [vmem:[%s191 + $0x1c0] sm:$0xff]
        %v344 = vld [vmem:[%s191 + $0x1c8] sm:$0xff]
        %v345 = vld [vmem:[%s191 + $0x1d0] sm:$0xff]
        %v346 = vld [vmem:[%s191 + $0x1d8] sm:$0xff]
        %v347 = vld [vmem:[%s191 + $0x1e0] sm:$0xff]
        %v348 = vld [vmem:[%s191 + $0x1e8] sm:$0xff]
        %v349 = vld [vmem:[%s191 + $0x1f0] sm:$0xff]
        %v350 = vld [vmem:[%s191 + $0x1f8] sm:$0xff]
        %v351 = vld [vmem:[%s191 + $0x200] sm:$0xff]
        %v352 = vld [vmem:[%s191 + $0x208] sm:$0xff]
        %v353 = vld [vmem:[%s191 + $0x210] sm:$0xff]
        %v354 = vld [vmem:[%s191 + $0x218] sm:$0xff]
        %v355 = vld [vmem:[%s191 + $0x220] sm:$0xff]
        %v356 = vld [vmem:[%s191 + $0x228] sm:$0xff]
        %v357 = vld [vmem:[%s191 + $0x230] sm:$0xff]
        %v358 = vld [vmem:[%s191 + $0x238] sm:$0xff]
        %v359 = vld [vmem:[%s191 + $0x240] sm:$0xff]
        %v360 = vld [vmem:[%s191 + $0x248] sm:$0xff]
        %v361 = vld [vmem:[%s191 + $0x250] sm:$0xff]
        %v362 = vld [vmem:[%s191 + $0x258] sm:$0xff]
        %v363 = vld [vmem:[%s191 + $0x260] sm:$0xff]
        %v364 = vld [vmem:[%s191 + $0x268] sm:$0xff]
        %v365 = vld [vmem:[%s191 + $0x270] sm:$0xff]
        %v366 = vld [vmem:[%s191 + $0x278] sm:$0xff]
        %v367 = vld [vmem:[%s191 + $0x280] sm:$0xff]
        %v368 = vld [vmem:[%s191 + $0x288] sm:$0xff]
        %v369 = vld [vmem:[%s191 + $0x290] sm:$0xff]
        %v370 = vld [vmem:[%s191 + $0x298] sm:$0xff]
        %v371 = vld [vmem:[%s191 + $0x2a0] sm:$0xff]
        %v372 = vld [vmem:[%s191 + $0x2a8] sm:$0xff]
        %v373 = vld [vmem:[%s191 + $0x2b0] sm:$0xff]
        %v374 = vld [vmem:[%s191 + $0x2b8] sm:$0xff]
        %v375 = vld [vmem:[%s191 + $0x2c0] sm:$0xff]
        %v376 = vld [vmem:[%s191 + $0x2c8] sm:$0xff]
        %v377 = vld [vmem:[%s191 + $0x2d0] sm:$0xff]
        %v378 = vld [vmem:[%s191 + $0x2d8] sm:$0xff]
        %v379 = vld [vmem:[%s191 + $0x2e0] sm:$0xff]
        %v380 = vld [vmem:[%s191 + $0x2e8] sm:$0xff]
        %v381 = vld [vmem:[%s191 + $0x2f0] sm:$0xff]
        %v382 = vld [vmem:[%s191 + $0x2f8] sm:$0xff]
        %v383 = vld [vmem:[%s191 + $0x300] sm:$0xff]
        %v384 = vld [vmem:[%s191 + $0x308] sm:$0xff]
        %v385 = vld [vmem:[%s191 + $0x310] sm:$0xff]
        %v386 = vld [vmem:[%s191 + $0x318] sm:$0xff]
        %v387 = vld [vmem:[%s191 + $0x320] sm:$0xff]
        %v388 = vld [vmem:[%s191 + $0x328] sm:$0xff]
        %v389 = vld [vmem:[%s191 + $0x330] sm:$0xff]
        %v390 = vld [vmem:[%s191 + $0x338] sm:$0xff]
        %v391 = vld [vmem:[%s191 + $0x340] sm:$0xff]
        %v392 = vld [vmem:[%s191 + $0x348] sm:$0xff]
        %v393 = vld [vmem:[%s191 + $0x350] sm:$0xff]
        %v394 = vld [vmem:[%s191 + $0x358] sm:$0xff]
        %v395 = vld [vmem:[%s191 + $0x360] sm:$0xff]
        %v396 = vld [vmem:[%s191 + $0x368] sm:$0xff]
        %v397 = vld [vmem:[%s191 + $0x370] sm:$0xff]
        %v398 = vld [vmem:[%s191 + $0x378] sm:$0xff]
        %v399 = vld [vmem:[%s191 + $0x380] sm:$0xff]
        %v400 = vld [vmem:[%s191 + $0x388] sm:$0xff]
        %v401 = vld [vmem:[%s191 + $0x390] sm:$0xff]
        %v402 = vld [vmem:[%s191 + $0x398] sm:$0xff]
        %v403 = vld [vmem:[%s191 + $0x3a0] sm:$0xff]
        %v404 = vld [vmem:[%s191 + $0x3a8] sm:$0xff]
        %v405 = vld [vmem:[%s191 + $0x3b0] sm:$0xff]
        %v406 = vld [vmem:[%s191 + $0x3b8] sm:$0xff]
        %v407 = vld [vmem:[%s191 + $0x3c0] sm:$0xff]
        %v408 = vld [vmem:[%s191 + $0x3c8] sm:$0xff]
        %v409 = vld [vmem:[%s191 + $0x3d0] sm:$0xff]
        %v410 = vld [vmem:[%s191 + $0x3d8] sm:$0xff]
        %v411 = vld [vmem:[%s191 + $0x3e0] sm:$0xff]
        %v412 = vld [vmem:[%s191 + $0x3e8] sm:$0xff]
        %v413 = vld [vmem:[%s191 + $0x3f0] sm:$0xff]
        %v414 = vld [vmem:[%s191 + $0x3f8] sm:$0xff]
        %v543 = vunpack.c.l.b16 %v287
        %v544 = vunpack.c.h.b16 %v287
        %v545 = vunpack.c.l.b16 %v288
        %v546 = vunpack.c.h.b16 %v288
        %v547 = vunpack.c.l.b16 %v289
        %v548 = vunpack.c.h.b16 %v289
        %v549 = vunpack.c.l.b16 %v290
        %v550 = vunpack.c.h.b16 %v290
        %v551 = vunpack.c.l.b16 %v291
        %v552 = vunpack.c.h.b16 %v291
        %v553 = vunpack.c.l.b16 %v292
        %v554 = vunpack.c.h.b16 %v292
        %v555 = vunpack.c.l.b16 %v293
        %v556 = vunpack.c.h.b16 %v293
        %v557 = vunpack.c.l.b16 %v294
        %v558 = vunpack.c.h.b16 %v294
        %v559 = vunpack.c.l.b16 %v295
        %v560 = vunpack.c.h.b16 %v295
        %v561 = vunpack.c.l.b16 %v296
        %v562 = vunpack.c.h.b16 %v296
        %v563 = vunpack.c.l.b16 %v297
        %v564 = vunpack.c.h.b16 %v297
        %v565 = vunpack.c.l.b16 %v298
        %v566 = vunpack.c.h.b16 %v298
        %v567 = vunpack.c.l.b16 %v299
        %v568 = vunpack.c.h.b16 %v299
        %v569 = vunpack.c.l.b16 %v300
        %v570 = vunpack.c.h.b16 %v300
        %v571 = vunpack.c.l.b16 %v301
        %v572 = vunpack.c.h.b16 %v301
        %v573 = vunpack.c.l.b16 %v302
        %v574 = vunpack.c.h.b16 %v302
        %v575 = vunpack.c.l.b16 %v303
        %v576 = vunpack.c.h.b16 %v303
        %v577 = vunpack.c.l.b16 %v304
        %v578 = vunpack.c.h.b16 %v304
        %v579 = vunpack.c.l.b16 %v305
        %v580 = vunpack.c.h.b16 %v305
        %v581 = vunpack.c.l.b16 %v306
        %v582 = vunpack.c.h.b16 %v306
        %v583 = vunpack.c.l.b16 %v307
        %v584 = vunpack.c.h.b16 %v307
        %v585 = vunpack.c.l.b16 %v308
        %v586 = vunpack.c.h.b16 %v308
        %v587 = vunpack.c.l.b16 %v309
        %v588 = vunpack.c.h.b16 %v309
        %v589 = vunpack.c.l.b16 %v310
        %v590 = vunpack.c.h.b16 %v310
        %v591 = vunpack.c.l.b16 %v311
        %v592 = vunpack.c.h.b16 %v311
        %v593 = vunpack.c.l.b16 %v312
        %v594 = vunpack.c.h.b16 %v312
        %v595 = vunpack.c.l.b16 %v313
        %v596 = vunpack.c.h.b16 %v313
        %v597 = vunpack.c.l.b16 %v314
        %v598 = vunpack.c.h.b16 %v314
        %v599 = vunpack.c.l.b16 %v315
        %v600 = vunpack.c.h.b16 %v315
        %v601 = vunpack.c.l.b16 %v316
        %v602 = vunpack.c.h.b16 %v316
        %v603 = vunpack.c.l.b16 %v317
        %v604 = vunpack.c.h.b16 %v317
        %v605 = vunpack.c.l.b16 %v318
        %v606 = vunpack.c.h.b16 %v318
        %v607 = vunpack.c.l.b16 %v319
        %v608 = vunpack.c.h.b16 %v319
        %v609 = vunpack.c.l.b16 %v320
        %v610 = vunpack.c.h.b16 %v320
        %v611 = vunpack.c.l.b16 %v321
        %v612 = vunpack.c.h.b16 %v321
        %v613 = vunpack.c.l.b16 %v322
        %v614 = vunpack.c.h.b16 %v322
        %v615 = vunpack.c.l.b16 %v323
        %v616 = vunpack.c.h.b16 %v323
        %v617 = vunpack.c.l.b16 %v324
        %v618 = vunpack.c.h.b16 %v324
        %v619 = vunpack.c.l.b16 %v325
        %v620 = vunpack.c.h.b16 %v325
        %v621 = vunpack.c.l.b16 %v326
        %v622 = vunpack.c.h.b16 %v326
        %v623 = vunpack.c.l.b16 %v327
        %v624 = vunpack.c.h.b16 %v327
        %v625 = vunpack.c.l.b16 %v328
        %v626 = vunpack.c.h.b16 %v328
        %v627 = vunpack.c.l.b16 %v329
        %v628 = vunpack.c.h.b16 %v329
        %v629 = vunpack.c.l.b16 %v330
        %v630 = vunpack.c.h.b16 %v330
        %v631 = vunpack.c.l.b16 %v331
        %v632 = vunpack.c.h.b16 %v331
        %v633 = vunpack.c.l.b16 %v332
        %v634 = vunpack.c.h.b16 %v332
        %v635 = vunpack.c.l.b16 %v333
        %v636 = vunpack.c.h.b16 %v333
        %v637 = vunpack.c.l.b16 %v334
        %v638 = vunpack.c.h.b16 %v334
        %v639 = vunpack.c.l.b16 %v335
        %v640 = vunpack.c.h.b16 %v335
        %v641 = vunpack.c.l.b16 %v336
        %v642 = vunpack.c.h.b16 %v336
        %v643 = vunpack.c.l.b16 %v337
        %v644 = vunpack.c.h.b16 %v337
        %v645 = vunpack.c.l.b16 %v338
        %v646 = vunpack.c.h.b16 %v338
        %v647 = vunpack.c.l.b16 %v339
        %v648 = vunpack.c.h.b16 %v339
        %v649 = vunpack.c.l.b16 %v340
        %v650 = vunpack.c.h.b16 %v340
        %v651 = vunpack.c.l.b16 %v341
        %v652 = vunpack.c.h.b16 %v341
        %v653 = vunpack.c.l.b16 %v342
        %v654 = vunpack.c.h.b16 %v342
        %v655 = vunpack.c.l.b16 %v343
        %v656 = vunpack.c.h.b16 %v343
        %v657 = vunpack.c.l.b16 %v344
        %v658 = vunpack.c.h.b16 %v344
        %v659 = vunpack.c.l.b16 %v345
        %v660 = vunpack.c.h.b16 %v345
        %v661 = vunpack.c.l.b16 %v346
        %v662 = vunpack.c.h.b16 %v346
        %v663 = vunpack.c.l.b16 %v347
        %v664 = vunpack.c.h.b16 %v347
        %v665 = vunpack.c.l.b16 %v348
        %v666 = vunpack.c.h.b16 %v348
        %v667 = vunpack.c.l.b16 %v349
        %v668 = vunpack.c.h.b16 %v349
        %v669 = vunpack.c.l.b16 %v350
        %v670 = vunpack.c.h.b16 %v350
        %v671 = vunpack.c.l.b16 %v351
        %v672 = vunpack.c.h.b16 %v351
        %v673 = vunpack.c.l.b16 %v352
        %v674 = vunpack.c.h.b16 %v352
        %v675 = vunpack.c.l.b16 %v353
        %v676 = vunpack.c.h.b16 %v353
        %v677 = vunpack.c.l.b16 %v354
        %v678 = vunpack.c.h.b16 %v354
        %v679 = vunpack.c.l.b16 %v355
        %v680 = vunpack.c.h.b16 %v355
        %v681 = vunpack.c.l.b16 %v356
        %v682 = vunpack.c.h.b16 %v356
        %v683 = vunpack.c.l.b16 %v357
        %v684 = vunpack.c.h.b16 %v357
        %v685 = vunpack.c.l.b16 %v358
        %v686 = vunpack.c.h.b16 %v358
        %v687 = vunpack.c.l.b16 %v359
        %v688 = vunpack.c.h.b16 %v359
        %v689 = vunpack.c.l.b16 %v360
        %v690 = vunpack.c.h.b16 %v360
        %v691 = vunpack.c.l.b16 %v361
        %v692 = vunpack.c.h.b16 %v361
        %v693 = vunpack.c.l.b16 %v362
        %v694 = vunpack.c.h.b16 %v362
        %v695 = vunpack.c.l.b16 %v363
        %v696 = vunpack.c.h.b16 %v363
        %v697 = vunpack.c.l.b16 %v364
        %v698 = vunpack.c.h.b16 %v364
        %v699 = vunpack.c.l.b16 %v365
        %v700 = vunpack.c.h.b16 %v365
        %v701 = vunpack.c.l.b16 %v366
        %v702 = vunpack.c.h.b16 %v366
        %v703 = vunpack.c.l.b16 %v367
        %v704 = vunpack.c.h.b16 %v367
        %v705 = vunpack.c.l.b16 %v368
        %v706 = vunpack.c.h.b16 %v368
        %v707 = vunpack.c.l.b16 %v369
        %v708 = vunpack.c.h.b16 %v369
        %v709 = vunpack.c.l.b16 %v370
        %v710 = vunpack.c.h.b16 %v370
        %v711 = vunpack.c.l.b16 %v371
        %v712 = vunpack.c.h.b16 %v371
        %v713 = vunpack.c.l.b16 %v372
        %v714 = vunpack.c.h.b16 %v372
        %v715 = vunpack.c.l.b16 %v373
        %v716 = vunpack.c.h.b16 %v373
        %v717 = vunpack.c.l.b16 %v374
        %v718 = vunpack.c.h.b16 %v374
        %v719 = vunpack.c.l.b16 %v375
        %v720 = vunpack.c.h.b16 %v375
        %v721 = vunpack.c.l.b16 %v376
        %v722 = vunpack.c.h.b16 %v376
        %v723 = vunpack.c.l.b16 %v377
        %v724 = vunpack.c.h.b16 %v377
        %v725 = vunpack.c.l.b16 %v378
        %v726 = vunpack.c.h.b16 %v378
        %v727 = vunpack.c.l.b16 %v379
        %v728 = vunpack.c.h.b16 %v379
        %v729 = vunpack.c.l.b16 %v380
        %v730 = vunpack.c.h.b16 %v380
        %v731 = vunpack.c.l.b16 %v381
        %v732 = vunpack.c.h.b16 %v381
        %v733 = vunpack.c.l.b16 %v382
        %v734 = vunpack.c.h.b16 %v382
        %v735 = vunpack.c.l.b16 %v383
        %v736 = vunpack.c.h.b16 %v383
        %v737 = vunpack.c.l.b16 %v384
        %v738 = vunpack.c.h.b16 %v384
        %v739 = vunpack.c.l.b16 %v385
        %v740 = vunpack.c.h.b16 %v385
        %v741 = vunpack.c.l.b16 %v386
        %v742 = vunpack.c.h.b16 %v386
        %v743 = vunpack.c.l.b16 %v387
        %v744 = vunpack.c.h.b16 %v387
        %v745 = vunpack.c.l.b16 %v388
        %v746 = vunpack.c.h.b16 %v388
        %v747 = vunpack.c.l.b16 %v389
        %v748 = vunpack.c.h.b16 %v389
        %v749 = vunpack.c.l.b16 %v390
        %v750 = vunpack.c.h.b16 %v390
        %v751 = vunpack.c.l.b16 %v391
        %v752 = vunpack.c.h.b16 %v391
        %v753 = vunpack.c.l.b16 %v392
        %v754 = vunpack.c.h.b16 %v392
        %v755 = vunpack.c.l.b16 %v393
        %v756 = vunpack.c.h.b16 %v393
        %v757 = vunpack.c.l.b16 %v394
        %v758 = vunpack.c.h.b16 %v394
        %v759 = vunpack.c.l.b16 %v395
        %v760 = vunpack.c.h.b16 %v395
        %v761 = vunpack.c.l.b16 %v396
        %v762 = vunpack.c.h.b16 %v396
        %v763 = vunpack.c.l.b16 %v397
        %v764 = vunpack.c.h.b16 %v397
        %v765 = vunpack.c.l.b16 %v398
        %v766 = vunpack.c.h.b16 %v398
        %v767 = vunpack.c.l.b16 %v399
        %v768 = vunpack.c.h.b16 %v399
        %v769 = vunpack.c.l.b16 %v400
        %v770 = vunpack.c.h.b16 %v400
        %v771 = vunpack.c.l.b16 %v401
        %v772 = vunpack.c.h.b16 %v401
        %v773 = vunpack.c.l.b16 %v402
        %v774 = vunpack.c.h.b16 %v402
        %v775 = vunpack.c.l.b16 %v403
        %v776 = vunpack.c.h.b16 %v403
        %v777 = vunpack.c.l.b16 %v404
        %v778 = vunpack.c.h.b16 %v404
        %v779 = vunpack.c.l.b16 %v405
        %v780 = vunpack.c.h.b16 %v405
        %v781 = vunpack.c.l.b16 %v406
        %v782 = vunpack.c.h.b16 %v406
        %v783 = vunpack.c.l.b16 %v407
        %v784 = vunpack.c.h.b16 %v407
        %v785 = vunpack.c.l.b16 %v408
        %v786 = vunpack.c.h.b16 %v408
        %v787 = vunpack.c.l.b16 %v409
        %v788 = vunpack.c.h.b16 %v409
        %v789 = vunpack.c.l.b16 %v410
        %v790 = vunpack.c.h.b16 %v410
        %v791 = vunpack.c.l.b16 %v411
        %v792 = vunpack.c.h.b16 %v411
        %v793 = vunpack.c.l.b16 %v412
        %v794 = vunpack.c.h.b16 %v412
        %v795 = vunpack.c.l.b16 %v413
        %v796 = vunpack.c.h.b16 %v413
        %v797 = vunpack.c.l.b16 %v414
        %v798 = vunpack.c.h.b16 %v414
        %v799 = vpack.c.b16 %v547, %v543
        %v800 = vpack.c.b16 %v548, %v544
        %v801 = vpack.c.b16 %v549, %v545
        %v802 = vpack.c.b16 %v550, %v546
        %v803 = vpack.c.b16 %v555, %v551
        %v804 = vpack.c.b16 %v556, %v552
        %v805 = vpack.c.b16 %v557, %v553
        %v806 = vpack.c.b16 %v558, %v554
        %v807 = vpack.c.b16 %v563, %v559
        %v808 = vpack.c.b16 %v564, %v560
        %v809 = vpack.c.b16 %v565, %v561
        %v810 = vpack.c.b16 %v566, %v562
        %v811 = vpack.c.b16 %v571, %v567
        %v812 = vpack.c.b16 %v572, %v568
        %v813 = vpack.c.b16 %v573, %v569
        %v814 = vpack.c.b16 %v574, %v570
        %v815 = vpack.c.b16 %v579, %v575
        %v816 = vpack.c.b16 %v580, %v576
        %v817 = vpack.c.b16 %v581, %v577
        %v818 = vpack.c.b16 %v582, %v578
        %v819 = vpack.c.b16 %v587, %v583
        %v820 = vpack.c.b16 %v588, %v584
        %v821 = vpack.c.b16 %v589, %v585
        %v822 = vpack.c.b16 %v590, %v586
        %v823 = vpack.c.b16 %v595, %v591
        %v824 = vpack.c.b16 %v596, %v592
        %v825 = vpack.c.b16 %v597, %v593
        %v826 = vpack.c.b16 %v598, %v594
        %v827 = vpack.c.b16 %v603, %v599
        %v828 = vpack.c.b16 %v604, %v600
        %v829 = vpack.c.b16 %v605, %v601
        %v830 = vpack.c.b16 %v606, %v602
        %v831 = vpack.c.b16 %v611, %v607
        %v832 = vpack.c.b16 %v612, %v608
        %v833 = vpack.c.b16 %v613, %v609
        %v834 = vpack.c.b16 %v614, %v610
        %v835 = vpack.c.b16 %v619, %v615
        %v836 = vpack.c.b16 %v620, %v616
        %v837 = vpack.c.b16 %v621, %v617
        %v838 = vpack.c.b16 %v622, %v618
        %v839 = vpack.c.b16 %v627, %v623
        %v840 = vpack.c.b16 %v628, %v624
        %v841 = vpack.c.b16 %v629, %v625
        %v842 = vpack.c.b16 %v630, %v626
        %v843 = vpack.c.b16 %v635, %v631
        %v844 = vpack.c.b16 %v636, %v632
        %v845 = vpack.c.b16 %v637, %v633
        %v846 = vpack.c.b16 %v638, %v634
        %v847 = vpack.c.b16 %v643, %v639
        %v848 = vpack.c.b16 %v644, %v640
        %v849 = vpack.c.b16 %v645, %v641
        %v850 = vpack.c.b16 %v646, %v642
        %v851 = vpack.c.b16 %v651, %v647
        %v852 = vpack.c.b16 %v652, %v648
        %v853 = vpack.c.b16 %v653, %v649
        %v854 = vpack.c.b16 %v654, %v650
        %v855 = vpack.c.b16 %v659, %v655
        %v856 = vpack.c.b16 %v660, %v656
        %v857 = vpack.c.b16 %v661, %v657
        %v858 = vpack.c.b16 %v662, %v658
        %v859 = vpack.c.b16 %v667, %v663
        %v860 = vpack.c.b16 %v668, %v664
        %v861 = vpack.c.b16 %v669, %v665
        %v862 = vpack.c.b16 %v670, %v666
        %v863 = vpack.c.b16 %v675, %v671
        %v864 = vpack.c.b16 %v676, %v672
        %v865 = vpack.c.b16 %v677, %v673
        %v866 = vpack.c.b16 %v678, %v674
        %v867 = vpack.c.b16 %v683, %v679
        %v868 = vpack.c.b16 %v684, %v680
        %v869 = vpack.c.b16 %v685, %v681
        %v870 = vpack.c.b16 %v686, %v682
        %v871 = vpack.c.b16 %v691, %v687
        %v872 = vpack.c.b16 %v692, %v688
        %v873 = vpack.c.b16 %v693, %v689
        %v874 = vpack.c.b16 %v694, %v690
        %v875 = vpack.c.b16 %v699, %v695
        %v876 = vpack.c.b16 %v700, %v696
        %v877 = vpack.c.b16 %v701, %v697
        %v878 = vpack.c.b16 %v702, %v698
        %v879 = vpack.c.b16 %v707, %v703
        %v880 = vpack.c.b16 %v708, %v704
        %v881 = vpack.c.b16 %v709, %v705
        %v882 = vpack.c.b16 %v710, %v706
        %v883 = vpack.c.b16 %v715, %v711
        %v884 = vpack.c.b16 %v716, %v712
        %v885 = vpack.c.b16 %v717, %v713
        %v886 = vpack.c.b16 %v718, %v714
        %v887 = vpack.c.b16 %v723, %v719
        %v888 = vpack.c.b16 %v724, %v720
        %v889 = vpack.c.b16 %v725, %v721
        %v890 = vpack.c.b16 %v726, %v722
        %v891 = vpack.c.b16 %v731, %v727
        %v892 = vpack.c.b16 %v732, %v728
        %v893 = vpack.c.b16 %v733, %v729
        %v894 = vpack.c.b16 %v734, %v730
        %v895 = vpack.c.b16 %v739, %v735
        %v896 = vpack.c.b16 %v740, %v736
        %v897 = vpack.c.b16 %v741, %v737
        %v898 = vpack.c.b16 %v742, %v738
        %v899 = vpack.c.b16 %v747, %v743
        %v900 = vpack.c.b16 %v748, %v744
        %v901 = vpack.c.b16 %v749, %v745
        %v902 = vpack.c.b16 %v750, %v746
        %v903 = vpack.c.b16 %v755, %v751
        %v904 = vpack.c.b16 %v756, %v752
        %v905 = vpack.c.b16 %v757, %v753
        %v906 = vpack.c.b16 %v758, %v754
        %v907 = vpack.c.b16 %v763, %v759
        %v908 = vpack.c.b16 %v764, %v760
        %v909 = vpack.c.b16 %v765, %v761
        %v910 = vpack.c.b16 %v766, %v762
        %v911 = vpack.c.b16 %v771, %v767
        %v912 = vpack.c.b16 %v772, %v768
        %v913 = vpack.c.b16 %v773, %v769
        %v914 = vpack.c.b16 %v774, %v770
        %v915 = vpack.c.b16 %v779, %v775
        %v916 = vpack.c.b16 %v780, %v776
        %v917 = vpack.c.b16 %v781, %v777
        %v918 = vpack.c.b16 %v782, %v778
        %v919 = vpack.c.b16 %v787, %v783
        %v920 = vpack.c.b16 %v788, %v784
        %v921 = vpack.c.b16 %v789, %v785
        %v922 = vpack.c.b16 %v790, %v786
        %v923 = vpack.c.b16 %v795, %v791
        %v924 = vpack.c.b16 %v796, %v792
        %v925 = vpack.c.b16 %v797, %v793
        %v926 = vpack.c.b16 %v798, %v794
        %v1119 = vunpack.c.l.b16 %v223
        %v1120 = vunpack.c.l.b16 %v224
        %v1121 = vunpack.c.l.b16 %v225
        %v1122 = vunpack.c.l.b16 %v226
        %v1123 = vunpack.c.l.b16 %v227
        %v1124 = vunpack.c.l.b16 %v228
        %v1125 = vunpack.c.l.b16 %v229
        %v1126 = vunpack.c.l.b16 %v230
        %v1127 = vunpack.c.l.b16 %v231
        %v1128 = vunpack.c.l.b16 %v232
        %v1129 = vunpack.c.l.b16 %v233
        %v1130 = vunpack.c.l.b16 %v234
        %v1131 = vunpack.c.l.b16 %v235
        %v1132 = vunpack.c.l.b16 %v236
        %v1133 = vunpack.c.l.b16 %v237
        %v1134 = vunpack.c.l.b16 %v238
        %v1135 = vunpack.c.l.b16 %v239
        %v1136 = vunpack.c.l.b16 %v240
        %v1137 = vunpack.c.l.b16 %v241
        %v1138 = vunpack.c.l.b16 %v242
        %v1139 = vunpack.c.l.b16 %v243
        %v1140 = vunpack.c.l.b16 %v244
        %v1141 = vunpack.c.l.b16 %v245
        %v1142 = vunpack.c.l.b16 %v246
        %v1143 = vunpack.c.l.b16 %v247
        %v1144 = vunpack.c.l.b16 %v248
        %v1145 = vunpack.c.l.b16 %v249
        %v1146 = vunpack.c.l.b16 %v250
        %v1147 = vunpack.c.l.b16 %v251
        %v1148 = vunpack.c.l.b16 %v252
        %v1149 = vunpack.c.l.b16 %v253
        %v1150 = vunpack.c.l.b16 %v254
        %v1151 = vunpack.c.l.b16 %v255
        %v1152 = vunpack.c.l.b16 %v256
        %v1153 = vunpack.c.l.b16 %v257
        %v1154 = vunpack.c.l.b16 %v258
        %v1155 = vunpack.c.l.b16 %v259
        %v1156 = vunpack.c.l.b16 %v260
        %v1157 = vunpack.c.l.b16 %v261
        %v1158 = vunpack.c.l.b16 %v262
        %v1159 = vunpack.c.l.b16 %v263
        %v1160 = vunpack.c.l.b16 %v264
        %v1161 = vunpack.c.l.b16 %v265
        %v1162 = vunpack.c.l.b16 %v266
        %v1163 = vunpack.c.l.b16 %v267
        %v1164 = vunpack.c.l.b16 %v268
        %v1165 = vunpack.c.l.b16 %v269
        %v1166 = vunpack.c.l.b16 %v270
        %v1167 = vunpack.c.l.b16 %v271
        %v1168 = vunpack.c.l.b16 %v272
        %v1169 = vunpack.c.l.b16 %v273
        %v1170 = vunpack.c.l.b16 %v274
        %v1171 = vunpack.c.l.b16 %v275
        %v1172 = vunpack.c.l.b16 %v276
        %v1173 = vunpack.c.l.b16 %v277
        %v1174 = vunpack.c.l.b16 %v278
        %v1175 = vunpack.c.l.b16 %v279
        %v1176 = vunpack.c.l.b16 %v280
        %v1177 = vunpack.c.l.b16 %v281
        %v1178 = vunpack.c.l.b16 %v282
        %v1179 = vunpack.c.l.b16 %v283
        %v1180 = vunpack.c.l.b16 %v284
        %v1181 = vunpack.c.l.b16 %v285
        %v1182 = vunpack.c.l.b16 %v286
        %v1183 = vpack.c.b16 %v1120, %v1119
        %v1184 = vpack.c.b16 %v1122, %v1121
        %v1185 = vpack.c.b16 %v1124, %v1123
        %v1186 = vpack.c.b16 %v1126, %v1125
        %v1187 = vpack.c.b16 %v1128, %v1127
        %v1188 = vpack.c.b16 %v1130, %v1129
        %v1189 = vpack.c.b16 %v1132, %v1131
        %v1190 = vpack.c.b16 %v1134, %v1133
        %v1191 = vpack.c.b16 %v1136, %v1135
        %v1192 = vpack.c.b16 %v1138, %v1137
        %v1193 = vpack.c.b16 %v1140, %v1139
        %v1194 = vpack.c.b16 %v1142, %v1141
        %v1195 = vpack.c.b16 %v1144, %v1143
        %v1196 = vpack.c.b16 %v1146, %v1145
        %v1197 = vpack.c.b16 %v1148, %v1147
        %v1198 = vpack.c.b16 %v1150, %v1149
        %v1199 = vpack.c.b16 %v1152, %v1151
        %v1200 = vpack.c.b16 %v1154, %v1153
        %v1201 = vpack.c.b16 %v1156, %v1155
        %v1202 = vpack.c.b16 %v1158, %v1157
        %v1203 = vpack.c.b16 %v1160, %v1159
        %v1204 = vpack.c.b16 %v1162, %v1161
        %v1205 = vpack.c.b16 %v1164, %v1163
        %v1206 = vpack.c.b16 %v1166, %v1165
        %v1207 = vpack.c.b16 %v1168, %v1167
        %v1208 = vpack.c.b16 %v1170, %v1169
        %v1209 = vpack.c.b16 %v1172, %v1171
        %v1210 = vpack.c.b16 %v1174, %v1173
        %v1211 = vpack.c.b16 %v1176, %v1175
        %v1212 = vpack.c.b16 %v1178, %v1177
        %v1213 = vpack.c.b16 %v1180, %v1179
        %v1214 = vpack.c.b16 %v1182, %v1181
        %1247 = vmatprep.subr.bf16.mxu0 0
        %1248 = vmatpush1.bf16.msra.mxu0 %v1190
        %1249 = vmatprep.subr.bf16.mxu0 0
        %1250 = vmatpush1.bf16.msra.mxu0 %v1189
        %1251 = vmatprep.subr.bf16.mxu0 0
        %1252 = vmatpush1.bf16.msra.mxu0 %v1188
        %1253 = vmatprep.subr.bf16.mxu0 0
        %1254 = vmatpush1.bf16.msra.mxu0 %v1187
        %1255 = vmatprep.subr.bf16.mxu0 0
        %1256 = vmatpush1.bf16.msra.mxu0 %v1186
        %1257 = vmatprep.subr.bf16.mxu0 0
        %1258 = vmatpush1.bf16.msra.mxu0 %v1185
        %1259 = vmatprep.subr.bf16.mxu0 0
        %1260 = vmatpush1.bf16.msra.mxu0 %v1184
        %1261 = vmatprep.subr.bf16.mxu0 0
        %1262 = vmatpush1.bf16.msra.mxu0 %v1183
        %1263 = vmatprep.subr.bf16.mxu0 0
        %1264 = vmatpush2.bf16.msra.mxu0 %v1198
        %1265 = vmatprep.subr.bf16.mxu0 0
        %1266 = vmatpush2.bf16.msra.mxu0 %v1197
        %1267 = vmatprep.subr.bf16.mxu0 0
        %1268 = vmatpush2.bf16.msra.mxu0 %v1196
        %1269 = vmatprep.subr.bf16.mxu0 0
        %1270 = vmatpush2.bf16.msra.mxu0 %v1195
        %1271 = vmatprep.subr.bf16.mxu0 0
        %1272 = vmatpush2.bf16.msra.mxu0 %v1194
        %1273 = vmatprep.subr.bf16.mxu0 0
        %1274 = vmatpush2.bf16.msra.mxu0 %v1193
        %1275 = vmatprep.subr.bf16.mxu0 0
        %1276 = vmatpush2.bf16.msra.mxu0 %v1192
        %1277 = vmatprep.subr.bf16.mxu0 0
        %1278 = vmatpush2.bf16.msra.mxu0 %v1191
        %1279 = vmatprep.mubr.bf16.mxu0 %v800
        %1280 = vmatmul.mubr.bf16.gmra.mxu0 %v799
        %v1281 = vpop.f32.mrf.mxu0
        %v1282 = vadd.f32 0.0, %v1281
        %v1283 = vpop.f32.mrf.mxu0
        %v1284 = vpop.f32.mrf.mxu0
        %v1285 = vadd.f32 0.0, %v1284
        %v1286 = vpop.f32.mrf.mxu0
        %1287 = vmatprep.mubr.bf16.mxu0 %v804
        %1288 = vmatmul.mubr.bf16.gmra.mxu0 %v803
        %v1289 = vpop.f32.mrf.mxu0
        %v1290 = vadd.f32 0.0, %v1289
        %v1291 = vpop.f32.mrf.mxu0
        %v1292 = vpop.f32.mrf.mxu0
        %v1293 = vadd.f32 0.0, %v1292
        %v1294 = vpop.f32.mrf.mxu0
        %1295 = vmatprep.mubr.bf16.mxu0 %v808
        %1296 = vmatmul.mubr.bf16.gmra.mxu0 %v807
        %v1297 = vpop.f32.mrf.mxu0
        %v1298 = vadd.f32 0.0, %v1297
        %v1299 = vpop.f32.mrf.mxu0
        %v1300 = vpop.f32.mrf.mxu0
        %v1301 = vadd.f32 0.0, %v1300
        %v1302 = vpop.f32.mrf.mxu0
        %1303 = vmatprep.mubr.bf16.mxu0 %v812
        %1304 = vmatmul.mubr.bf16.gmra.mxu0 %v811
        %v1305 = vpop.f32.mrf.mxu0
        %v1306 = vadd.f32 0.0, %v1305
        %v1307 = vpop.f32.mrf.mxu0
        %v1308 = vpop.f32.mrf.mxu0
        %v1309 = vadd.f32 0.0, %v1308
        %v1310 = vpop.f32.mrf.mxu0
        %1311 = vmatprep.mubr.bf16.mxu0 %v816
        %1312 = vmatmul.mubr.bf16.gmra.mxu0 %v815
        %v1313 = vpop.f32.mrf.mxu0
        %v1314 = vadd.f32 0.0, %v1313
        %v1315 = vpop.f32.mrf.mxu0
        %v1316 = vpop.f32.mrf.mxu0
        %v1317 = vadd.f32 0.0, %v1316
        %v1318 = vpop.f32.mrf.mxu0
        %1319 = vmatprep.mubr.bf16.mxu0 %v820
        %1320 = vmatmul.mubr.bf16.gmra.mxu0 %v819
        %v1321 = vpop.f32.mrf.mxu0
        %v1322 = vadd.f32 0.0, %v1321
        %v1323 = vpop.f32.mrf.mxu0
        %v1324 = vpop.f32.mrf.mxu0
        %v1325 = vadd.f32 0.0, %v1324
        %v1326 = vpop.f32.mrf.mxu0
        %1327 = vmatprep.mubr.bf16.mxu0 %v824
        %1328 = vmatmul.mubr.bf16.gmra.mxu0 %v823
        %v1329 = vpop.f32.mrf.mxu0
        %v1330 = vadd.f32 0.0, %v1329
        %v1331 = vpop.f32.mrf.mxu0
        %v1332 = vpop.f32.mrf.mxu0
        %v1333 = vadd.f32 0.0, %v1332
        %v1334 = vpop.f32.mrf.mxu0
        %1335 = vmatprep.mubr.bf16.mxu0 %v828
        %1336 = vmatmul.mubr.bf16.gmra.mxu0 %v827
        %v1337 = vpop.f32.mrf.mxu0
        %v1338 = vadd.f32 0.0, %v1337
        %v1339 = vpop.f32.mrf.mxu0
        %v1340 = vpop.f32.mrf.mxu0
        %v1341 = vadd.f32 0.0, %v1340
        %v1342 = vpop.f32.mrf.mxu0
        %1343 = vmatprep.mubr.bf16.mxu0 %v832
        %1344 = vmatmul.mubr.bf16.gmra.mxu0 %v831
        %v1345 = vpop.f32.mrf.mxu0
        %v1346 = vadd.f32 0.0, %v1345
        %v1347 = vpop.f32.mrf.mxu0
        %v1348 = vpop.f32.mrf.mxu0
        %v1349 = vadd.f32 0.0, %v1348
        %v1350 = vpop.f32.mrf.mxu0
        %1351 = vmatprep.mubr.bf16.mxu0 %v836
        %1352 = vmatmul.mubr.bf16.gmra.mxu0 %v835
        %v1353 = vpop.f32.mrf.mxu0
        %v1354 = vadd.f32 0.0, %v1353
        %v1355 = vpop.f32.mrf.mxu0
        %v1356 = vpop.f32.mrf.mxu0
        %v1357 = vadd.f32 0.0, %v1356
        %v1358 = vpop.f32.mrf.mxu0
        %1359 = vmatprep.mubr.bf16.mxu0 %v840
        %1360 = vmatmul.mubr.bf16.gmra.mxu0 %v839
        %v1361 = vpop.f32.mrf.mxu0
        %v1362 = vadd.f32 0.0, %v1361
        %v1363 = vpop.f32.mrf.mxu0
        %v1364 = vpop.f32.mrf.mxu0
        %v1365 = vadd.f32 0.0, %v1364
        %v1366 = vpop.f32.mrf.mxu0
        %1367 = vmatprep.mubr.bf16.mxu0 %v844
        %1368 = vmatmul.mubr.bf16.gmra.mxu0 %v843
        %v1369 = vpop.f32.mrf.mxu0
        %v1370 = vadd.f32 0.0, %v1369
        %v1371 = vpop.f32.mrf.mxu0
        %v1372 = vpop.f32.mrf.mxu0
        %v1373 = vadd.f32 0.0, %v1372
        %v1374 = vpop.f32.mrf.mxu0
        %1375 = vmatprep.mubr.bf16.mxu0 %v848
        %1376 = vmatmul.mubr.bf16.gmra.mxu0 %v847
        %v1377 = vpop.f32.mrf.mxu0
        %v1378 = vadd.f32 0.0, %v1377
        %v1379 = vpop.f32.mrf.mxu0
        %v1380 = vpop.f32.mrf.mxu0
        %v1381 = vadd.f32 0.0, %v1380
        %v1382 = vpop.f32.mrf.mxu0
        %1383 = vmatprep.mubr.bf16.mxu0 %v852
        %1384 = vmatmul.mubr.bf16.gmra.mxu0 %v851
        %v1385 = vpop.f32.mrf.mxu0
        %v1386 = vadd.f32 0.0, %v1385
        %v1387 = vpop.f32.mrf.mxu0
        %v1388 = vpop.f32.mrf.mxu0
        %v1389 = vadd.f32 0.0, %v1388
        %v1390 = vpop.f32.mrf.mxu0
        %1391 = vmatprep.mubr.bf16.mxu0 %v856
        %1392 = vmatmul.mubr.bf16.gmra.mxu0 %v855
        %v1393 = vpop.f32.mrf.mxu0
        %v1394 = vadd.f32 0.0, %v1393
        %v1395 = vpop.f32.mrf.mxu0
        %v1396 = vpop.f32.mrf.mxu0
        %v1397 = vadd.f32 0.0, %v1396
        %v1398 = vpop.f32.mrf.mxu0
        %1399 = vmatprep.mubr.bf16.mxu0 %v860
        %1400 = vmatmul.mubr.bf16.gmra.mxu0 %v859
        %v1401 = vpop.f32.mrf.mxu0
        %v1402 = vadd.f32 0.0, %v1401
        %v1403 = vpop.f32.mrf.mxu0
        %v1404 = vpop.f32.mrf.mxu0
        %v1405 = vadd.f32 0.0, %v1404
        %v1406 = vpop.f32.mrf.mxu0
        %1407 = vmatprep.mubr.bf16.mxu0 %v864
        %1408 = vmatmul.mubr.bf16.gmra.mxu0 %v863
        %v1409 = vpop.f32.mrf.mxu0
        %v1410 = vadd.f32 0.0, %v1409
        %v1411 = vpop.f32.mrf.mxu0
        %v1412 = vpop.f32.mrf.mxu0
        %v1413 = vadd.f32 0.0, %v1412
        %v1414 = vpop.f32.mrf.mxu0
        %1415 = vmatprep.mubr.bf16.mxu0 %v868
        %1416 = vmatmul.mubr.bf16.gmra.mxu0 %v867
        %v1417 = vpop.f32.mrf.mxu0
        %v1418 = vadd.f32 0.0, %v1417
        %v1419 = vpop.f32.mrf.mxu0
        %v1420 = vpop.f32.mrf.mxu0
        %v1421 = vadd.f32 0.0, %v1420
        %v1422 = vpop.f32.mrf.mxu0
        %1423 = vmatprep.mubr.bf16.mxu0 %v872
        %1424 = vmatmul.mubr.bf16.gmra.mxu0 %v871
        %v1425 = vpop.f32.mrf.mxu0
        %v1426 = vadd.f32 0.0, %v1425
        %v1427 = vpop.f32.mrf.mxu0
        %v1428 = vpop.f32.mrf.mxu0
        %v1429 = vadd.f32 0.0, %v1428
        %v1430 = vpop.f32.mrf.mxu0
        %1431 = vmatprep.mubr.bf16.mxu0 %v876
        %1432 = vmatmul.mubr.bf16.gmra.mxu0 %v875
        %v1433 = vpop.f32.mrf.mxu0
        %v1434 = vadd.f32 0.0, %v1433
        %v1435 = vpop.f32.mrf.mxu0
        %v1436 = vpop.f32.mrf.mxu0
        %v1437 = vadd.f32 0.0, %v1436
        %v1438 = vpop.f32.mrf.mxu0
        %1439 = vmatprep.mubr.bf16.mxu0 %v880
        %1440 = vmatmul.mubr.bf16.gmra.mxu0 %v879
        %v1441 = vpop.f32.mrf.mxu0
        %v1442 = vadd.f32 0.0, %v1441
        %v1443 = vpop.f32.mrf.mxu0
        %v1444 = vpop.f32.mrf.mxu0
        %v1445 = vadd.f32 0.0, %v1444
        %v1446 = vpop.f32.mrf.mxu0
        %1447 = vmatprep.mubr.bf16.mxu0 %v884
        %1448 = vmatmul.mubr.bf16.gmra.mxu0 %v883
        %v1449 = vpop.f32.mrf.mxu0
        %v1450 = vadd.f32 0.0, %v1449
        %v1451 = vpop.f32.mrf.mxu0
        %v1452 = vpop.f32.mrf.mxu0
        %v1453 = vadd.f32 0.0, %v1452
        %v1454 = vpop.f32.mrf.mxu0
        %1455 = vmatprep.mubr.bf16.mxu0 %v888
        %1456 = vmatmul.mubr.bf16.gmra.mxu0 %v887
        %v1457 = vpop.f32.mrf.mxu0
        %v1458 = vadd.f32 0.0, %v1457
        %v1459 = vpop.f32.mrf.mxu0
        %v1460 = vpop.f32.mrf.mxu0
        %v1461 = vadd.f32 0.0, %v1460
        %v1462 = vpop.f32.mrf.mxu0
        %1463 = vmatprep.mubr.bf16.mxu0 %v892
        %1464 = vmatmul.mubr.bf16.gmra.mxu0 %v891
        %v1465 = vpop.f32.mrf.mxu0
        %v1466 = vadd.f32 0.0, %v1465
        %v1467 = vpop.f32.mrf.mxu0
        %v1468 = vpop.f32.mrf.mxu0
        %v1469 = vadd.f32 0.0, %v1468
        %v1470 = vpop.f32.mrf.mxu0
        %1471 = vmatprep.mubr.bf16.mxu0 %v896
        %1472 = vmatmul.mubr.bf16.gmra.mxu0 %v895
        %v1473 = vpop.f32.mrf.mxu0
        %v1474 = vadd.f32 0.0, %v1473
        %v1475 = vpop.f32.mrf.mxu0
        %v1476 = vpop.f32.mrf.mxu0
        %v1477 = vadd.f32 0.0, %v1476
        %v1478 = vpop.f32.mrf.mxu0
        %1479 = vmatprep.mubr.bf16.mxu0 %v900
        %1480 = vmatmul.mubr.bf16.gmra.mxu0 %v899
        %v1481 = vpop.f32.mrf.mxu0
        %v1482 = vadd.f32 0.0, %v1481
        %v1483 = vpop.f32.mrf.mxu0
        %v1484 = vpop.f32.mrf.mxu0
        %v1485 = vadd.f32 0.0, %v1484
        %v1486 = vpop.f32.mrf.mxu0
        %1487 = vmatprep.mubr.bf16.mxu0 %v904
        %1488 = vmatmul.mubr.bf16.gmra.mxu0 %v903
        %v1489 = vpop.f32.mrf.mxu0
        %v1490 = vadd.f32 0.0, %v1489
        %v1491 = vpop.f32.mrf.mxu0
        %v1492 = vpop.f32.mrf.mxu0
        %v1493 = vadd.f32 0.0, %v1492
        %v1494 = vpop.f32.mrf.mxu0
        %1495 = vmatprep.mubr.bf16.mxu0 %v908
        %1496 = vmatmul.mubr.bf16.gmra.mxu0 %v907
        %v1497 = vpop.f32.mrf.mxu0
        %v1498 = vadd.f32 0.0, %v1497
        %v1499 = vpop.f32.mrf.mxu0
        %v1500 = vpop.f32.mrf.mxu0
        %v1501 = vadd.f32 0.0, %v1500
        %v1502 = vpop.f32.mrf.mxu0
        %1503 = vmatprep.mubr.bf16.mxu0 %v912
        %1504 = vmatmul.mubr.bf16.gmra.mxu0 %v911
        %v1505 = vpop.f32.mrf.mxu0
        %v1506 = vadd.f32 0.0, %v1505
        %v1507 = vpop.f32.mrf.mxu0
        %v1508 = vpop.f32.mrf.mxu0
        %v1509 = vadd.f32 0.0, %v1508
        %v1510 = vpop.f32.mrf.mxu0
        %1511 = vmatprep.mubr.bf16.mxu0 %v916
        %1512 = vmatmul.mubr.bf16.gmra.mxu0 %v915
        %v1513 = vpop.f32.mrf.mxu0
        %v1514 = vadd.f32 0.0, %v1513
        %v1515 = vpop.f32.mrf.mxu0
        %v1516 = vpop.f32.mrf.mxu0
        %v1517 = vadd.f32 0.0, %v1516
        %v1518 = vpop.f32.mrf.mxu0
        %1519 = vmatprep.mubr.bf16.mxu0 %v920
        %1520 = vmatmul.mubr.bf16.gmra.mxu0 %v919
        %v1521 = vpop.f32.mrf.mxu0
        %v1522 = vadd.f32 0.0, %v1521
        %v1523 = vpop.f32.mrf.mxu0
        %v1524 = vpop.f32.mrf.mxu0
        %v1525 = vadd.f32 0.0, %v1524
        %v1526 = vpop.f32.mrf.mxu0
        %1527 = vmatprep.mubr.bf16.mxu0 %v924
        %1528 = vmatmul.mubr.bf16.gmra.mxu0 %v923
        %v1529 = vpop.f32.mrf.mxu0
        %v1530 = vadd.f32 0.0, %v1529
        %v1531 = vpop.f32.mrf.mxu0
        %v1532 = vpop.f32.mrf.mxu0
        %v1533 = vadd.f32 0.0, %v1532
        %v1534 = vpop.f32.mrf.mxu0
        %1535 = vdwg.mxu0
        %1536 = vmatprep.subr.bf16.mxu0 0
        %1537 = vmatpush1.bf16.msra.mxu0 %v1206
        %1538 = vmatprep.subr.bf16.mxu0 0
        %1539 = vmatpush1.bf16.msra.mxu0 %v1205
        %1540 = vmatprep.subr.bf16.mxu0 0
        %1541 = vmatpush1.bf16.msra.mxu0 %v1204
        %1542 = vmatprep.subr.bf16.mxu0 0
        %1543 = vmatpush1.bf16.msra.mxu0 %v1203
        %1544 = vmatprep.subr.bf16.mxu0 0
        %1545 = vmatpush1.bf16.msra.mxu0 %v1202
        %1546 = vmatprep.subr.bf16.mxu0 0
        %1547 = vmatpush1.bf16.msra.mxu0 %v1201
        %1548 = vmatprep.subr.bf16.mxu0 0
        %1549 = vmatpush1.bf16.msra.mxu0 %v1200
        %1550 = vmatprep.subr.bf16.mxu0 0
        %1551 = vmatpush1.bf16.msra.mxu0 %v1199
        %1552 = vmatprep.subr.bf16.mxu0 0
        %1553 = vmatpush2.bf16.msra.mxu0 %v1214
        %1554 = vmatprep.subr.bf16.mxu0 0
        %1555 = vmatpush2.bf16.msra.mxu0 %v1213
        %1556 = vmatprep.subr.bf16.mxu0 0
        %1557 = vmatpush2.bf16.msra.mxu0 %v1212
        %1558 = vmatprep.subr.bf16.mxu0 0
        %1559 = vmatpush2.bf16.msra.mxu0 %v1211
        %1560 = vmatprep.subr.bf16.mxu0 0
        %1561 = vmatpush2.bf16.msra.mxu0 %v1210
        %1562 = vmatprep.subr.bf16.mxu0 0
        %1563 = vmatpush2.bf16.msra.mxu0 %v1209
        %1564 = vmatprep.subr.bf16.mxu0 0
        %1565 = vmatpush2.bf16.msra.mxu0 %v1208
        %1566 = vmatprep.subr.bf16.mxu0 0
        %1567 = vmatpush2.bf16.msra.mxu0 %v1207
        %1568 = vmatprep.mubr.bf16.mxu0 %v802
        %1569 = vmatmul.mubr.bf16.gmra.mxu0 %v801
        %v1570 = vpop.f32.mrf.mxu0
        %v1571 = vadd.f32 %v1282, %v1570
        %v1572 = vpop.f32.mrf.mxu0
        %v1573 = vpop.f32.mrf.mxu0
        %v1574 = vadd.f32 %v1285, %v1573
        %v1575 = vpop.f32.mrf.mxu0
        %1576 = vmatprep.mubr.bf16.mxu0 %v806
        %1577 = vmatmul.mubr.bf16.gmra.mxu0 %v805
        %v1578 = vpop.f32.mrf.mxu0
        %v1579 = vadd.f32 %v1290, %v1578
        %v1580 = vpop.f32.mrf.mxu0
        %v1581 = vpop.f32.mrf.mxu0
        %v1582 = vadd.f32 %v1293, %v1581
        %v1583 = vpop.f32.mrf.mxu0
        %1584 = vmatprep.mubr.bf16.mxu0 %v810
        %1585 = vmatmul.mubr.bf16.gmra.mxu0 %v809
        %v1586 = vpop.f32.mrf.mxu0
        %v1587 = vadd.f32 %v1298, %v1586
        %v1588 = vpop.f32.mrf.mxu0
        %v1589 = vpop.f32.mrf.mxu0
        %v1590 = vadd.f32 %v1301, %v1589
        %v1591 = vpop.f32.mrf.mxu0
        %1592 = vmatprep.mubr.bf16.mxu0 %v814
        %1593 = vmatmul.mubr.bf16.gmra.mxu0 %v813
        %v1594 = vpop.f32.mrf.mxu0
        %v1595 = vadd.f32 %v1306, %v1594
        %v1596 = vpop.f32.mrf.mxu0
        %v1597 = vpop.f32.mrf.mxu0
        %v1598 = vadd.f32 %v1309, %v1597
        %v1599 = vpop.f32.mrf.mxu0
        %1600 = vmatprep.mubr.bf16.mxu0 %v818
        %1601 = vmatmul.mubr.bf16.gmra.mxu0 %v817
        %v1602 = vpop.f32.mrf.mxu0
        %v1603 = vadd.f32 %v1314, %v1602
        %v1604 = vpop.f32.mrf.mxu0
        %v1605 = vpop.f32.mrf.mxu0
        %v1606 = vadd.f32 %v1317, %v1605
        %v1607 = vpop.f32.mrf.mxu0
        %1608 = vmatprep.mubr.bf16.mxu0 %v822
        %1609 = vmatmul.mubr.bf16.gmra.mxu0 %v821
        %v1610 = vpop.f32.mrf.mxu0
        %v1611 = vadd.f32 %v1322, %v1610
        %v1612 = vpop.f32.mrf.mxu0
        %v1613 = vpop.f32.mrf.mxu0
        %v1614 = vadd.f32 %v1325, %v1613
        %v1615 = vpop.f32.mrf.mxu0
        %1616 = vmatprep.mubr.bf16.mxu0 %v826
        %1617 = vmatmul.mubr.bf16.gmra.mxu0 %v825
        %v1618 = vpop.f32.mrf.mxu0
        %v1619 = vadd.f32 %v1330, %v1618
        %v1620 = vpop.f32.mrf.mxu0
        %v1621 = vpop.f32.mrf.mxu0
        %v1622 = vadd.f32 %v1333, %v1621
        %v1623 = vpop.f32.mrf.mxu0
        %1624 = vmatprep.mubr.bf16.mxu0 %v830
        %1625 = vmatmul.mubr.bf16.gmra.mxu0 %v829
        %v1626 = vpop.f32.mrf.mxu0
        %v1627 = vadd.f32 %v1338, %v1626
        %v1628 = vpop.f32.mrf.mxu0
        %v1629 = vpop.f32.mrf.mxu0
        %v1630 = vadd.f32 %v1341, %v1629
        %v1631 = vpop.f32.mrf.mxu0
        %1632 = vmatprep.mubr.bf16.mxu0 %v834
        %1633 = vmatmul.mubr.bf16.gmra.mxu0 %v833
        %v1634 = vpop.f32.mrf.mxu0
        %v1635 = vadd.f32 %v1346, %v1634
        %v1636 = vpop.f32.mrf.mxu0
        %v1637 = vpop.f32.mrf.mxu0
        %v1638 = vadd.f32 %v1349, %v1637
        %v1639 = vpop.f32.mrf.mxu0
        %1640 = vmatprep.mubr.bf16.mxu0 %v838
        %1641 = vmatmul.mubr.bf16.gmra.mxu0 %v837
        %v1642 = vpop.f32.mrf.mxu0
        %v1643 = vadd.f32 %v1354, %v1642
        %v1644 = vpop.f32.mrf.mxu0
        %v1645 = vpop.f32.mrf.mxu0
        %v1646 = vadd.f32 %v1357, %v1645
        %v1647 = vpop.f32.mrf.mxu0
        %1648 = vmatprep.mubr.bf16.mxu0 %v842
        %1649 = vmatmul.mubr.bf16.gmra.mxu0 %v841
        %v1650 = vpop.f32.mrf.mxu0
        %v1651 = vadd.f32 %v1362, %v1650
        %v1652 = vpop.f32.mrf.mxu0
        %v1653 = vpop.f32.mrf.mxu0
        %v1654 = vadd.f32 %v1365, %v1653
        %v1655 = vpop.f32.mrf.mxu0
        %1656 = vmatprep.mubr.bf16.mxu0 %v846
        %1657 = vmatmul.mubr.bf16.gmra.mxu0 %v845
        %v1658 = vpop.f32.mrf.mxu0
        %v1659 = vadd.f32 %v1370, %v1658
        %v1660 = vpop.f32.mrf.mxu0
        %v1661 = vpop.f32.mrf.mxu0
        %v1662 = vadd.f32 %v1373, %v1661
        %v1663 = vpop.f32.mrf.mxu0
        %1664 = vmatprep.mubr.bf16.mxu0 %v850
        %1665 = vmatmul.mubr.bf16.gmra.mxu0 %v849
        %v1666 = vpop.f32.mrf.mxu0
        %v1667 = vadd.f32 %v1378, %v1666
        %v1668 = vpop.f32.mrf.mxu0
        %v1669 = vpop.f32.mrf.mxu0
        %v1670 = vadd.f32 %v1381, %v1669
        %v1671 = vpop.f32.mrf.mxu0
        %1672 = vmatprep.mubr.bf16.mxu0 %v854
        %1673 = vmatmul.mubr.bf16.gmra.mxu0 %v853
        %v1674 = vpop.f32.mrf.mxu0
        %v1675 = vadd.f32 %v1386, %v1674
        %v1676 = vpop.f32.mrf.mxu0
        %v1677 = vpop.f32.mrf.mxu0
        %v1678 = vadd.f32 %v1389, %v1677
        %v1679 = vpop.f32.mrf.mxu0
        %1680 = vmatprep.mubr.bf16.mxu0 %v858
        %1681 = vmatmul.mubr.bf16.gmra.mxu0 %v857
        %v1682 = vpop.f32.mrf.mxu0
        %v1683 = vadd.f32 %v1394, %v1682
        %v1684 = vpop.f32.mrf.mxu0
        %v1685 = vpop.f32.mrf.mxu0
        %v1686 = vadd.f32 %v1397, %v1685
        %v1687 = vpop.f32.mrf.mxu0
        %1688 = vmatprep.mubr.bf16.mxu0 %v862
        %1689 = vmatmul.mubr.bf16.gmra.mxu0 %v861
        %v1690 = vpop.f32.mrf.mxu0
        %v1691 = vadd.f32 %v1402, %v1690
        %v1692 = vpop.f32.mrf.mxu0
        %v1693 = vpop.f32.mrf.mxu0
        %v1694 = vadd.f32 %v1405, %v1693
        %v1695 = vpop.f32.mrf.mxu0
        %1696 = vmatprep.mubr.bf16.mxu0 %v866
        %1697 = vmatmul.mubr.bf16.gmra.mxu0 %v865
        %v1698 = vpop.f32.mrf.mxu0
        %v1699 = vadd.f32 %v1410, %v1698
        %v1700 = vpop.f32.mrf.mxu0
        %v1701 = vpop.f32.mrf.mxu0
        %v1702 = vadd.f32 %v1413, %v1701
        %v1703 = vpop.f32.mrf.mxu0
        %1704 = vmatprep.mubr.bf16.mxu0 %v870
        %1705 = vmatmul.mubr.bf16.gmra.mxu0 %v869
        %v1706 = vpop.f32.mrf.mxu0
        %v1707 = vadd.f32 %v1418, %v1706
        %v1708 = vpop.f32.mrf.mxu0
        %v1709 = vpop.f32.mrf.mxu0
        %v1710 = vadd.f32 %v1421, %v1709
        %v1711 = vpop.f32.mrf.mxu0
        %1712 = vmatprep.mubr.bf16.mxu0 %v874
        %1713 = vmatmul.mubr.bf16.gmra.mxu0 %v873
        %v1714 = vpop.f32.mrf.mxu0
        %v1715 = vadd.f32 %v1426, %v1714
        %v1716 = vpop.f32.mrf.mxu0
        %v1717 = vpop.f32.mrf.mxu0
        %v1718 = vadd.f32 %v1429, %v1717
        %v1719 = vpop.f32.mrf.mxu0
        %1720 = vmatprep.mubr.bf16.mxu0 %v878
        %1721 = vmatmul.mubr.bf16.gmra.mxu0 %v877
        %v1722 = vpop.f32.mrf.mxu0
        %v1723 = vadd.f32 %v1434, %v1722
        %v1724 = vpop.f32.mrf.mxu0
        %v1725 = vpop.f32.mrf.mxu0
        %v1726 = vadd.f32 %v1437, %v1725
        %v1727 = vpop.f32.mrf.mxu0
        %1728 = vmatprep.mubr.bf16.mxu0 %v882
        %1729 = vmatmul.mubr.bf16.gmra.mxu0 %v881
        %v1730 = vpop.f32.mrf.mxu0
        %v1731 = vadd.f32 %v1442, %v1730
        %v1732 = vpop.f32.mrf.mxu0
        %v1733 = vpop.f32.mrf.mxu0
        %v1734 = vadd.f32 %v1445, %v1733
        %v1735 = vpop.f32.mrf.mxu0
        %1736 = vmatprep.mubr.bf16.mxu0 %v886
        %1737 = vmatmul.mubr.bf16.gmra.mxu0 %v885
        %v1738 = vpop.f32.mrf.mxu0
        %v1739 = vadd.f32 %v1450, %v1738
        %v1740 = vpop.f32.mrf.mxu0
        %v1741 = vpop.f32.mrf.mxu0
        %v1742 = vadd.f32 %v1453, %v1741
        %v1743 = vpop.f32.mrf.mxu0
        %1744 = vmatprep.mubr.bf16.mxu0 %v890
        %1745 = vmatmul.mubr.bf16.gmra.mxu0 %v889
        %v1746 = vpop.f32.mrf.mxu0
        %v1747 = vadd.f32 %v1458, %v1746
        %v1748 = vpop.f32.mrf.mxu0
        %v1749 = vpop.f32.mrf.mxu0
        %v1750 = vadd.f32 %v1461, %v1749
        %v1751 = vpop.f32.mrf.mxu0
        %1752 = vmatprep.mubr.bf16.mxu0 %v894
        %1753 = vmatmul.mubr.bf16.gmra.mxu0 %v893
        %v1754 = vpop.f32.mrf.mxu0
        %v1755 = vadd.f32 %v1466, %v1754
        %v1756 = vpop.f32.mrf.mxu0
        %v1757 = vpop.f32.mrf.mxu0
        %v1758 = vadd.f32 %v1469, %v1757
        %v1759 = vpop.f32.mrf.mxu0
        %1760 = vmatprep.mubr.bf16.mxu0 %v898
        %1761 = vmatmul.mubr.bf16.gmra.mxu0 %v897
        %v1762 = vpop.f32.mrf.mxu0
        %v1763 = vadd.f32 %v1474, %v1762
        %v1764 = vpop.f32.mrf.mxu0
        %v1765 = vpop.f32.mrf.mxu0
        %v1766 = vadd.f32 %v1477, %v1765
        %v1767 = vpop.f32.mrf.mxu0
        %1768 = vmatprep.mubr.bf16.mxu0 %v902
        %1769 = vmatmul.mubr.bf16.gmra.mxu0 %v901
        %v1770 = vpop.f32.mrf.mxu0
        %v1771 = vadd.f32 %v1482, %v1770
        %v1772 = vpop.f32.mrf.mxu0
        %v1773 = vpop.f32.mrf.mxu0
        %v1774 = vadd.f32 %v1485, %v1773
        %v1775 = vpop.f32.mrf.mxu0
        %1776 = vmatprep.mubr.bf16.mxu0 %v906
        %1777 = vmatmul.mubr.bf16.gmra.mxu0 %v905
        %v1778 = vpop.f32.mrf.mxu0
        %v1779 = vadd.f32 %v1490, %v1778
        %v1780 = vpop.f32.mrf.mxu0
        %v1781 = vpop.f32.mrf.mxu0
        %v1782 = vadd.f32 %v1493, %v1781
        %v1783 = vpop.f32.mrf.mxu0
        %1784 = vmatprep.mubr.bf16.mxu0 %v910
        %1785 = vmatmul.mubr.bf16.gmra.mxu0 %v909
        %v1786 = vpop.f32.mrf.mxu0
        %v1787 = vadd.f32 %v1498, %v1786
        %v1788 = vpop.f32.mrf.mxu0
        %v1789 = vpop.f32.mrf.mxu0
        %v1790 = vadd.f32 %v1501, %v1789
        %v1791 = vpop.f32.mrf.mxu0
        %1792 = vmatprep.mubr.bf16.mxu0 %v914
        %1793 = vmatmul.mubr.bf16.gmra.mxu0 %v913
        %v1794 = vpop.f32.mrf.mxu0
        %v1795 = vadd.f32 %v1506, %v1794
        %v1796 = vpop.f32.mrf.mxu0
        %v1797 = vpop.f32.mrf.mxu0
        %v1798 = vadd.f32 %v1509, %v1797
        %v1799 = vpop.f32.mrf.mxu0
        %1800 = vmatprep.mubr.bf16.mxu0 %v918
        %1801 = vmatmul.mubr.bf16.gmra.mxu0 %v917
        %v1802 = vpop.f32.mrf.mxu0
        %v1803 = vadd.f32 %v1514, %v1802
        %v1804 = vpop.f32.mrf.mxu0
        %v1805 = vpop.f32.mrf.mxu0
        %v1806 = vadd.f32 %v1517, %v1805
        %v1807 = vpop.f32.mrf.mxu0
        %1808 = vmatprep.mubr.bf16.mxu0 %v922
        %1809 = vmatmul.mubr.bf16.gmra.mxu0 %v921
        %v1810 = vpop.f32.mrf.mxu0
        %v1811 = vadd.f32 %v1522, %v1810
        %v1812 = vpop.f32.mrf.mxu0
        %v1813 = vpop.f32.mrf.mxu0
        %v1814 = vadd.f32 %v1525, %v1813
        %v1815 = vpop.f32.mrf.mxu0
        %1816 = vmatprep.mubr.bf16.mxu0 %v926
        %1817 = vmatmul.mubr.bf16.gmra.mxu0 %v925
        %v1818 = vpop.f32.mrf.mxu0
        %v1819 = vadd.f32 %v1530, %v1818
        %v1820 = vpop.f32.mrf.mxu0
        %v1821 = vpop.f32.mrf.mxu0
        %v1822 = vadd.f32 %v1533, %v1821
        %v1823 = vpop.f32.mrf.mxu0
        %1824 = vdwg.mxu0
        %1825 = vst [vmem:[%s215] sm:$0xff] %v1571
        %1826 = vst [vmem:[%s215 + $0x8] sm:$0xff] %v1574
        %1827 = vst [vmem:[%s215 + $0x10] sm:$0xff] %v1579
        %1828 = vst [vmem:[%s215 + $0x18] sm:$0xff] %v1582
        %1829 = vst [vmem:[%s215 + $0x20] sm:$0xff] %v1587
        %1830 = vst [vmem:[%s215 + $0x28] sm:$0xff] %v1590
        %1831 = vst [vmem:[%s215 + $0x30] sm:$0xff] %v1595
        %1832 = vst [vmem:[%s215 + $0x38] sm:$0xff] %v1598
        %1833 = vst [vmem:[%s215 + $0x40] sm:$0xff] %v1603
        %1834 = vst [vmem:[%s215 + $0x48] sm:$0xff] %v1606
        %1835 = vst [vmem:[%s215 + $0x50] sm:$0xff] %v1611
        %1836 = vst [vmem:[%s215 + $0x58] sm:$0xff] %v1614
        %1837 = vst [vmem:[%s215 + $0x60] sm:$0xff] %v1619
        %1838 = vst [vmem:[%s215 + $0x68] sm:$0xff] %v1622
        %1839 = vst [vmem:[%s215 + $0x70] sm:$0xff] %v1627
        %1840 = vst [vmem:[%s215 + $0x78] sm:$0xff] %v1630
        %1841 = vst [vmem:[%s215 + $0x80] sm:$0xff] %v1635
        %1842 = vst [vmem:[%s215 + $0x88] sm:$0xff] %v1638
        %1843 = vst [vmem:[%s215 + $0x90] sm:$0xff] %v1643
        %1844 = vst [vmem:[%s215 + $0x98] sm:$0xff] %v1646
        %1845 = vst [vmem:[%s215 + $0xa0] sm:$0xff] %v1651
        %1846 = vst [vmem:[%s215 + $0xa8] sm:$0xff] %v1654
        %1847 = vst [vmem:[%s215 + $0xb0] sm:$0xff] %v1659
        %1848 = vst [vmem:[%s215 + $0xb8] sm:$0xff] %v1662
        %1849 = vst [vmem:[%s215 + $0xc0] sm:$0xff] %v1667
        %1850 = vst [vmem:[%s215 + $0xc8] sm:$0xff] %v1670
        %1851 = vst [vmem:[%s215 + $0xd0] sm:$0xff] %v1675
        %1852 = vst [vmem:[%s215 + $0xd8] sm:$0xff] %v1678
        %1853 = vst [vmem:[%s215 + $0xe0] sm:$0xff] %v1683
        %1854 = vst [vmem:[%s215 + $0xe8] sm:$0xff] %v1686
        %1855 = vst [vmem:[%s215 + $0xf0] sm:$0xff] %v1691
        %1856 = vst [vmem:[%s215 + $0xf8] sm:$0xff] %v1694
        %1857 = vst [vmem:[%s215 + $0x100] sm:$0xff] %v1699
        %1858 = vst [vmem:[%s215 + $0x108] sm:$0xff] %v1702
        %1859 = vst [vmem:[%s215 + $0x110] sm:$0xff] %v1707
        %1860 = vst [vmem:[%s215 + $0x118] sm:$0xff] %v1710
        %1861 = vst [vmem:[%s215 + $0x120] sm:$0xff] %v1715
        %1862 = vst [vmem:[%s215 + $0x128] sm:$0xff] %v1718
        %1863 = vst [vmem:[%s215 + $0x130] sm:$0xff] %v1723
        %1864 = vst [vmem:[%s215 + $0x138] sm:$0xff] %v1726
        %1865 = vst [vmem:[%s215 + $0x140] sm:$0xff] %v1731
        %1866 = vst [vmem:[%s215 + $0x148] sm:$0xff] %v1734
        %1867 = vst [vmem:[%s215 + $0x150] sm:$0xff] %v1739
        %1868 = vst [vmem:[%s215 + $0x158] sm:$0xff] %v1742
        %1869 = vst [vmem:[%s215 + $0x160] sm:$0xff] %v1747
        %1870 = vst [vmem:[%s215 + $0x168] sm:$0xff] %v1750
        %1871 = vst [vmem:[%s215 + $0x170] sm:$0xff] %v1755
        %1872 = vst [vmem:[%s215 + $0x178] sm:$0xff] %v1758
        %1873 = vst [vmem:[%s215 + $0x180] sm:$0xff] %v1763
        %1874 = vst [vmem:[%s215 + $0x188] sm:$0xff] %v1766
        %1875 = vst [vmem:[%s215 + $0x190] sm:$0xff] %v1771
        %1876 = vst [vmem:[%s215 + $0x198] sm:$0xff] %v1774
        %1877 = vst [vmem:[%s215 + $0x1a0] sm:$0xff] %v1779
        %1878 = vst [vmem:[%s215 + $0x1a8] sm:$0xff] %v1782
        %1879 = vst [vmem:[%s215 + $0x1b0] sm:$0xff] %v1787
        %1880 = vst [vmem:[%s215 + $0x1b8] sm:$0xff] %v1790
        %1881 = vst [vmem:[%s215 + $0x1c0] sm:$0xff] %v1795
        %1882 = vst [vmem:[%s215 + $0x1c8] sm:$0xff] %v1798
        %1883 = vst [vmem:[%s215 + $0x1d0] sm:$0xff] %v1803
        %1884 = vst [vmem:[%s215 + $0x1d8] sm:$0xff] %v1806
        %1885 = vst [vmem:[%s215 + $0x1e0] sm:$0xff] %v1811
        %1886 = vst [vmem:[%s215 + $0x1e8] sm:$0xff] %v1814
        %1887 = vst [vmem:[%s215 + $0x1f0] sm:$0xff] %v1819
        %1888 = vst [vmem:[%s215 + $0x1f8] sm:$0xff] %v1822
        %s1889 = sand.u32 %s109, 1
        %s1890 = scalar_lea.sflag [#allocation4], %s1889
        %s1891 = sand.u32 %s109, 1
        %s1892 = smul.addr %s1891, 512
        %s1893 = scalar_lea.vmem [#allocation7], %s1892
        // Predicated region
        $region37: #{tpu_custom_call.1} parent=27 // pred_check
          %p1894 = pneg %p119
        $region38: #{tpu_custom_call.1} parent=27 // pred_check_branch
          %1896 = sbr.rel (%p1894) target = $region40
        $region39: #{tpu_custom_call.1} parent=27 // pred_region
          %s1897 = smul.u32 64, %s26
          %s1899 = ssub.s32 8192, 8192
          %1900 = vsyncadd %s1890, %s1899
          %s1901 = sadd.s32 %s28, %s1897
          %s1902 = smul.addr %s27, 64
          %s1903 = sadd.s32 %s1901, %s1902
          %s1904 = smul.addr %s1903, 128
          %s1905 = scalar_lea.hbm %s2, %s1904
          %s1906 = sshll.u32 %s1893, 4
          %s1907 = int_to_ptr.vmem [resolvable:$true] %s1906
          %1912 = dma.vmem_to_hbm [thread:$0]  %s1907, 8192, %s1905, %s1890, 128, 128, 8
        $region40: #{tpu_custom_call.1} parent=27 // pred_fallthru
          _
      $region28: #{tpu_custom_call.1} parent=5 // pred_fallthru
        _
      %p1913 = scmp.le.s32.totalorder 2, %s15
      // Predicated region
      $region41: #{tpu_custom_call.1} parent=5 // pred_check
        %p1914 = pneg %p1913
      $region42: #{tpu_custom_call.1} parent=5 // pred_check_branch
        %1916 = sbr.rel (%p1914) target = $region44
      $region43: #{tpu_custom_call.1} parent=5 // pred_region
        %s1917 = ssub.s32 %s15, 2
        // Predicated region
        $region45: #{tpu_custom_call.1} parent=43 // pred_check
          %p1918 = pneg %p125
        $region46: #{tpu_custom_call.1} parent=43 // pred_check_branch
          %1920 = sbr.rel (%p1918) target = $region48
        $region47: #{tpu_custom_call.1} parent=43 // pred_region
          %s1921 = sand.u32 %s110, 1
          %s1922 = scalar_lea.sflag [#allocation4], %s1921
          %s1923 = sand.u32 %s110, 1
          %s1924 = smul.addr %s1923, 512
          %s1925 = scalar_lea.vmem [#allocation7], %s1924
          %1926 = dma.done %s1922, 8192
        $region48: #{tpu_custom_call.1} parent=43 // pred_fallthru
          _
      $region44: #{tpu_custom_call.1} parent=5 // pred_fallthru
        _
    $region6: #{tpu_custom_call.1} parent=1 // loop_footer
      %s19 = sadd.s32 1, %s15
    $region7: #{tpu_custom_call.1} parent=1 // loop_footer_branch
      %14 = sbr.rel target = $region3
    $region8: #{tpu_custom_call.1} parent=1 // loop_exit
      _
    %1927 = vsyncpa [#allocation3], 1
    %s1928 = scalar_lea.sflag [#allocation3], 1
    %1929 = vsyncpa %s1928, 1
    %1930 = vsyncpa [#allocation6], 1
    %1931 = vsyncpa [#allocation4], 1
    %s1932 = scalar_lea.sflag [#allocation4], 1
    %1933 = vsyncpa %s1932, 1

</llo_original>
